<compile_context>
chip_gen: v7x
topology: tpu7x:2x2x1
jax: 0.10.0
libtpu: 0.0.40
codegen_flags: <defaults>
</compile_context>

<pallas_src>
import functools
import jax
import jax.numpy as jnp
from jax import lax
from jax.experimental import pallas as pl
from jax.experimental.pallas import tpu as pltpu

_VMEM_LIMIT = 48 * 1024 * 1024  # explicit scoped-VMEM cap (headroom on v7x's 64 MiB)


# --------------------------------------------------------------------------------------
# Small helpers
# --------------------------------------------------------------------------------------
def _round_up(v, m):
    return ((v + m - 1) // m) * m


def _pad_rows(x, rows_padded):
    rows = x.shape[0]
    if rows_padded == rows:
        return x
    pad = ((0, rows_padded - rows),) + ((0, 0),) * (x.ndim - 1)
    return jnp.pad(x, pad)


def _pick_row_tiling(rows, max_tile=512):
    """Row tile (multiple of 8, <= max_tile) and padded row count with an even step count."""
    tm = min(max_tile, _round_up(rows, 8))
    rows_p = _round_up(rows, tm)
    steps = rows_p // tm
    if steps > 1 and steps % 2 == 1:      # keep both v7x TensorCores balanced
        rows_p += tm
    return tm, rows_p


def _layernorm_f32(x, g, b, eps):
    mu = jnp.mean(x, axis=-1, keepdims=True)
    xc = x - mu
    var = jnp.mean(xc * xc, axis=-1, keepdims=True)
    return xc * lax.rsqrt(var + eps) * g + b


def _softmax_rows_f32(x):
    x = x - jnp.max(x, axis=-1, keepdims=True)
    e = jnp.exp(x)
    return e * pl.reciprocal(jnp.sum(e, axis=-1, keepdims=True), approx=True)


# --------------------------------------------------------------------------------------
# Kernel 1: self-attention block + LN2 + cross-attn query-side projections (fused)
#   grid over batch N, dimension_semantics=("parallel",)
# --------------------------------------------------------------------------------------
def _sa_caq_kernel(tgt_ref, qpos_ref, sa_w_ref, sa_b_ref, sao_w_ref, sao_b_ref,
                   n2g_ref, n2b_ref, caq_w_ref, caq_b_ref,
                   tgt_out_ref, caq_out_ref, attn_sc,
                   *, H, Dh, L, P, eps):
    D = H * Dh
    LP = L * P
    n_off = H * LP * 2

    tgt = tgt_ref[0].astype(jnp.float32)        # (Lq, D)
    qpos = qpos_ref[0].astype(jnp.float32)      # (Lq, D)
    qk_bf = (tgt + qpos).astype(jnp.bfloat16)
    t_bf = tgt.astype(jnp.bfloat16)

    # fused QKV projection (weights pre-cast to bf16 in the wrapper); f32 accumulation
    sa_w = sa_w_ref[...]                        # (D, 3D) bf16
    sa_b = sa_b_ref[...]                        # (1, 3D) f32
    qkp = jnp.dot(qk_bf, sa_w[:, :2 * D], preferred_element_type=jnp.float32) + sa_b[:, :2 * D]
    v = jnp.dot(t_bf, sa_w[:, 2 * D:], preferred_element_type=jnp.float32) + sa_b[:, 2 * D:]

    # per-head attention: scale folded into q, bf16 casts done once, no explicit transposes,
    # head outputs written straight into a (Lq, D) VMEM scratch slice (no list/concat).
    scale = 1.0 / (float(Dh) ** 0.5)
    q_bf = (qkp[:, :D] * scale).astype(jnp.bfloat16)
    k_bf = qkp[:, D:].astype(jnp.bfloat16)
    v_bf = v.astype(jnp.bfloat16)
    for h in range(H):
        sl = slice(h * Dh, (h + 1) * Dh)
        s = lax.dot_general(q_bf[:, sl], k_bf[:, sl],
                            (((1,), (1,)), ((), ())),
                            preferred_element_type=jnp.float32)        # (Lq, Lq)
        p_attn = _softmax_rows_f32(s)
        attn_sc[:, sl] = jnp.dot(p_attn.astype(jnp.bfloat16), v_bf[:, sl],
                                 preferred_element_type=jnp.float32)
    attn = attn_sc[...]                                                # (Lq, D)

    attn = jnp.dot(attn.astype(jnp.bfloat16), sao_w_ref[...],
                   preferred_element_type=jnp.float32) + sao_b_ref[...]
    x = tgt + attn                              # dropout2 = identity
    x = _layernorm_f32(x, n2g_ref[...], n2b_ref[...], eps)
    tgt_out_ref[0] = x.astype(tgt_out_ref.dtype)

    # cross-attn query-side projections: [sampling offsets | attention-weight logits] fused
    caq = (x + qpos).astype(jnp.bfloat16)
    proj = jnp.dot(caq, caq_w_ref[...], preferred_element_type=jnp.float32) + caq_b_ref[...]

    # one fused output: raw offsets followed by per-head softmaxed attention weights
    caq_out_ref[0, :, :n_off] = proj[:, :n_off].astype(caq_out_ref.dtype)
    # TODO(synk): on v5e replace the per-head loop by one wide exp with segmented reductions.
    for h in range(H):
        lo = n_off + h * LP
        hi = n_off + (h + 1) * LP
        caq_out_ref[0, :, lo:hi] = _softmax_rows_f32(proj[:, lo:hi]).astype(caq_out_ref.dtype)


def pallas_sa_block(tgt, qpos, sa_in_w_bf, sa_in_b, sa_out_w_bf, sa_out_b,
                    n2g, n2b, caq_w_bf, caq_b, *, H, Dh, L, P, eps=1e-5):
    N, Lq, D = tgt.shape
    LP = L * P
    n_caq = H * LP * 3                      # offsets (2*H*LP) + attention weights (H*LP)
    kernel = functools.partial(_sa_caq_kernel, H=H, Dh=Dh, L=L, P=P, eps=eps)

    batch3 = lambda last: pl.BlockSpec((1, Lq, last), lambda n: (n, 0, 0))
    full2 = lambda shape: pl.BlockSpec(shape, lambda n: (0, 0))

    return pl.pallas_call(
        kernel,
        out_shape=(jax.ShapeDtypeStruct((N, Lq, D), tgt.dtype),
                   jax.ShapeDtypeStruct((N, Lq, n_caq), jnp.float32)),
        grid=(N,),
        in_specs=[batch3(D),                           # tgt
                  batch3(D),                           # query_pos
                  full2(sa_in_w_bf.shape),             # (D, 3D) bf16
                  full2((1, sa_in_b.shape[0])),
                  full2(sa_out_w_bf.shape),            # (D, D) bf16
                  full2((1, sa_out_b.shape[0])),
                  full2((1, n2g.shape[0])),
                  full2((1, n2b.shape[0])),
                  full2(caq_w_bf.shape),               # (D, H*LP*3) bf16
                  full2((1, caq_b.shape[0]))],
        out_specs=(batch3(D), batch3(n_caq)),
        scratch_shapes=[pltpu.VMEM((Lq, D), jnp.float32)],
        compiler_params=pltpu.CompilerParams(dimension_semantics=("parallel",),
                                             vmem_limit_bytes=_VMEM_LIMIT),
    )(tgt, qpos, sa_in_w_bf, sa_in_b.reshape(1, -1), sa_out_w_bf, sa_out_b.reshape(1, -1),
      n2g.reshape(1, -1), n2b.reshape(1, -1), caq_w_bf, caq_b.reshape(1, -1))


# --------------------------------------------------------------------------------------
# Kernel 2: value projection over src (row-tiled linear, bf16 MXU, optional fused row mask)
# --------------------------------------------------------------------------------------
def _linear_kernel(x_ref, w_ref, b_ref, o_ref):
    acc = jnp.dot(x_ref[...], w_ref[...], preferred_element_type=jnp.float32)
    o_ref[...] = (acc + b_ref[...]).astype(o_ref.dtype)


def _linear_mask_kernel(x_ref, w_ref, b_ref, m_ref, o_ref):
    acc = jnp.dot(x_ref[...], w_ref[...], preferred_element_type=jnp.float32)
    o_ref[...] = ((acc + b_ref[...]) * m_ref[...]).astype(o_ref.dtype)


def pallas_linear(x, w, b, row_mask=None, out_dtype=None, max_tile=512):
    """x: (M, K) (bf16 recommended), w: (K, Nout) bf16, b: (Nout,) f32 -> (M, Nout)."""
    M, K = x.shape
    Nout = w.shape[1]
    if out_dtype is None:
        out_dtype = x.dtype
    tm, Mp = _pick_row_tiling(M, max_tile)
    xp = _pad_rows(x, Mp)
    row = lambda i: (i, 0)
    full = lambda i: (0, 0)

    in_specs = [pl.BlockSpec((tm, K), row),
                pl.BlockSpec((K, Nout), full),
                pl.BlockSpec((1, Nout), full)]
    args = [xp, w, b.reshape(1, Nout)]
    kernel = _linear_kernel
    if row_mask is not None:
        kernel = _linear_mask_kernel
        in_specs.append(pl.BlockSpec((tm, 1), row))
        args.append(_pad_rows(row_mask.reshape(M, 1).astype(jnp.float32), Mp))

    out = pl.pallas_call(
        kernel,
        out_shape=jax.ShapeDtypeStruct((Mp, Nout), out_dtype),
        grid=(Mp // tm,),
        in_specs=in_specs,
        out_specs=pl.BlockSpec((tm, Nout), row),
        compiler_params=pltpu.CompilerParams(dimension_semantics=("parallel",),
                                             vmem_limit_bytes=_VMEM_LIMIT),
    )(*args)
    return out[:M]


# --------------------------------------------------------------------------------------
# Kernel 3: deform-attn output proj + residual + LN1 + FFN + residual + LN3 (fused)
# --------------------------------------------------------------------------------------
def _ca_ffn_kernel(tgt_ref, agg_ref, cao_w_ref, cao_b_ref, n1g_ref, n1b_ref,
                   w1_ref, b1_ref, w2_ref, b2_ref, n3g_ref, n3b_ref, out_ref, *, eps):
    x_res = tgt_ref[...].astype(jnp.float32)                     # (R, D)
    ca = jnp.dot(agg_ref[...].astype(jnp.bfloat16), cao_w_ref[...],
                 preferred_element_type=jnp.float32) + cao_b_ref[...]
    x = _layernorm_f32(x_res + ca, n1g_ref[...], n1b_ref[...], eps)   # dropout1 = identity

    h = jnp.dot(x.astype(jnp.bfloat16), w1_ref[...],
                preferred_element_type=jnp.float32) + b1_ref[...]
    h = jnp.maximum(h, 0.0)                                      # ReLU
    y = jnp.dot(h.astype(jnp.bfloat16), w2_ref[...],
                preferred_element_type=jnp.float32) + b2_ref[...]
    out = _layernorm_f32(x + y, n3g_ref[...], n3b_ref[...], eps)      # dropout3/4 = identity
    out_ref[...] = out.astype(out_ref.dtype)


def pallas_ca_ffn_block(tgt2, agg, cao_w_bf, cao_b, n1g, n1b, w1_bf, b1, w2_bf, b2,
                        n3g, n3b, eps=1e-5, max_tile=512):
    M, D = tgt2.shape
    Dff = w1_bf.shape[1]
    tm, Mp = _pick_row_tiling(M, max_tile)
    kernel = functools.partial(_ca_ffn_kernel, eps=eps)
    row = lambda i: (i, 0)
    full = lambda i: (0, 0)
    out = pl.pallas_call(
        kernel,
        out_shape=jax.ShapeDtypeStruct((Mp, D), tgt2.dtype),
        grid=(Mp // tm,),
        in_specs=[pl.BlockSpec((tm, D), row),
                  pl.BlockSpec((tm, D), row),
                  pl.BlockSpec((D, D), full),
                  pl.BlockSpec((1, D), full),
                  pl.BlockSpec((1, D), full),
                  pl.BlockSpec((1, D), full),
                  pl.BlockSpec((D, Dff), full),
                  pl.BlockSpec((1, Dff), full),
                  pl.BlockSpec((Dff, D), full),
                  pl.BlockSpec((1, D), full),
                  pl.BlockSpec((1, D), full),
                  pl.BlockSpec((1, D), full)],
        out_specs=pl.BlockSpec((tm, D), row),
        compiler_params=pltpu.CompilerParams(dimension_semantics=("parallel",),
                                             vmem_limit_bytes=_VMEM_LIMIT),
    )(_pad_rows(tgt2, Mp), _pad_rows(agg, Mp), cao_w_bf, cao_b.reshape(1, -1),
      n1g.reshape(1, -1), n1b.reshape(1, -1), w1_bf, b1.reshape(1, -1), w2_bf,
      b2.reshape(1, -1), n3g.reshape(1, -1), n3b.reshape(1, -1))
    return out[:M]


# --------------------------------------------------------------------------------------
# Plain-JAX glue: bilinear grid_sample (data-dependent gather), matching
# torch.grid_sample(mode='bilinear', padding_mode='zeros', align_corners=False) followed by
# the attention-weighted sum over levels/points.  All 4 corners x L levels are collapsed into
# ONE take_along_axis on bf16 value in (N,H,S,Dh) layout.
# TODO(synk): move this into a Pallas gather kernel (value in memory_space=pl.ANY, indices via
# scalar prefetch, manual double-buffered DMA gathers) — it dominates at production sizes.
# --------------------------------------------------------------------------------------
def _deform_sample_and_aggregate(value_nhsd, spatial_shapes, level_start_index,
                                 sampling_locations, attention_weights):
    # value_nhsd: (N, H, S, Dh); sampling_locations: (N, Lq, H, L, P, 2) in [0, 1]
    # attention_weights: (N, Lq, H, L, P)   ->   output (N, Lq, H*Dh) f32
    N, H, S, Dh = value_nhsd.shape
    _, Lq, _, L, P, _ = sampling_locations.shape

    loc = jnp.transpose(sampling_locations, (0, 2, 1, 3, 4, 5)).astype(jnp.float32)  # (N,H,Lq,L,P,2)
    attw = jnp.transpose(attention_weights, (0, 2, 1, 3, 4)).astype(jnp.float32)     # (N,H,Lq,L,P)

    Hs = jnp.array([h for (h, w) in spatial_shapes], jnp.float32).reshape(1, 1, 1, L, 1)
    Ws = jnp.array([w for (h, w) in spatial_shapes], jnp.float32).reshape(1, 1, 1, L, 1)
    Hs_i = Hs.astype(jnp.int32)
    Ws_i = Ws.astype(jnp.int32)
    starts = jnp.array(level_start_index, jnp.int32).reshape(1, 1, 1, L, 1)

    x = loc[..., 0] * Ws - 0.5
    y = loc[..., 1] * Hs - 0.5
    x0 = jnp.floor(x)
    y0 = jnp.floor(y)
    x1 = x0 + 1.0
    y1 = y0 + 1.0
    wx1 = x - x0
    wx0 = 1.0 - wx1
    wy1 = y - y0
    wy0 = 1.0 - wy1

    idx_parts, w_parts = [], []
    for xi, yi, wgt in ((x0, y0, wx0 * wy0), (x1, y0, wx1 * wy0),
                        (x0, y1, wx0 * wy1), (x1, y1, wx1 * wy1)):
        xi_i = xi.astype(jnp.int32)
        yi_i = yi.astype(jnp.int32)
        valid = ((xi_i >= 0) & (xi_i < Ws_i) & (yi_i >= 0) & (yi_i < Hs_i)).astype(jnp.float32)
        idx = starts + jnp.clip(yi_i, 0, Hs_i - 1) * Ws_i + jnp.clip(xi_i, 0, Ws_i - 1)
        idx_parts.append(idx)
        w_parts.append(wgt * valid * attw)

    K = L * P * 4
    idx_all = jnp.stack(idx_parts, axis=-1).reshape(N, H, Lq * K)
    w_all = jnp.stack(w_parts, axis=-1).reshape(N, H, Lq, K)

    g = jnp.take_along_axis(value_nhsd, idx_all[..., None], axis=2)        # (N,H,Lq*K,Dh)
    g = g.reshape(N, H, Lq, K, Dh).astype(jnp.float32)
    out = jnp.einsum('nhqk,nhqkd->nhqd', w_all, g)
    return jnp.transpose(out, (0, 2, 1, 3)).reshape(N, Lq, H * Dh)


# --------------------------------------------------------------------------------------
# DeformableTransformerDecoderLayer forward (self-attn -> cross deform-attn -> FFN)
# --------------------------------------------------------------------------------------
def decoder_layer_forward(p, tgt, query_pos, reference_points_input, src_bf,
                          spatial_shapes, level_start_index, n_heads, n_levels, n_points,
                          padding_mask=None):
    N, Lq, D = tgt.shape
    H, L, P = n_heads, n_levels, n_points
    Dh = D // H
    LP = L * P
    n_off = H * LP * 2

    qpos = query_pos if query_pos is not None else jnp.zeros_like(tgt)

    # ---- Kernel 1: self-attn + LN2 + offsets / attention-weight softmax (fused output) ----
    tgt2, caq = pallas_sa_block(
        tgt, qpos, p['sa_in_w'], p['sa_in_b'], p['sa_out_w'], p['sa_out_b'],
        p['norm2_g'], p['norm2_b'], p['caq_w'], p['caq_b'], H=H, Dh=Dh, L=L, P=P)
    offsets = caq[..., :n_off].reshape(N, Lq, H, L, P, 2)
    attention_weights = caq[..., n_off:].reshape(N, Lq, H, L, P)

    # ---- Kernel 2: value projection over the flattened multi-scale features (bf16 I/O) ----
    S = src_bf.shape[1]
    row_mask = None
    if padding_mask is not None:
        row_mask = 1.0 - padding_mask.reshape(N * S).astype(jnp.float32)
    value = pallas_linear(src_bf.reshape(N * S, D), p['ca_value_w'], p['ca_value_b'],
                          row_mask=row_mask, out_dtype=jnp.bfloat16).reshape(N, S, D)
    # single (N,H,S,Dh) transpose per layer (instead of per level) for the gather below
    value_nhsd = jnp.transpose(value.reshape(N, S, H, Dh), (0, 2, 1, 3))

    # sampling locations (2-point branch): ref + offset / [W_l, H_l]
    offset_normalizer = jnp.array([[w_, h_] for (h_, w_) in spatial_shapes], dtype=jnp.float32)
    sampling_locations = (reference_points_input[:, :, None, :, None, :]
                          + offsets / offset_normalizer[None, None, None, :, None, :])

    agg = _deform_sample_and_aggregate(value_nhsd, spatial_shapes, level_start_index,
                                       sampling_locations, attention_weights)

    # ---- Kernel 3: output proj + residual + LN1 + FFN + residual + LN3 ----
    out = pallas_ca_ffn_block(
        tgt2.reshape(N * Lq, D), agg.reshape(N * Lq, D),
        p['ca_out_w'], p['ca_out_b'], p['norm1_g'], p['norm1_b'],
        p['ffn_w1'], p['ffn_b1'], p['ffn_w2'], p['ffn_b2'],
        p['norm3_g'], p['norm3_b']).reshape(N, Lq, D)

    return out, sampling_locations, attention_weights


# --------------------------------------------------------------------------------------
# Parameter preparation: bf16 weight matrices + fused cross-attn query-side projection
# --------------------------------------------------------------------------------------
def _prepare_layer_params(p):
    q = dict(p)
    for name in ('sa_in_w', 'sa_out_w', 'ca_value_w', 'ca_out_w', 'ffn_w1', 'ffn_w2'):
        q[name] = p[name].astype(jnp.bfloat16)
    q['caq_w'] = jnp.concatenate([p['ca_off_w'], p['ca_attw_w']], axis=1).astype(jnp.bfloat16)
    q['caq_b'] = jnp.concatenate([p['ca_off_b'], p['ca_attw_b']], axis=0).astype(jnp.float32)
    return q


# --------------------------------------------------------------------------------------
# DeformableTransformerDecoder.forward
# --------------------------------------------------------------------------------------
def deformable_transformer_decoder_forward(layer_params, tgt, reference_points, src,
                                           src_spatial_shapes, src_level_start_index,
                                           src_valid_ratios, query_pos=None,
                                           src_padding_mask=None,
                                           n_heads=4, n_levels=4, n_points=4,
                                           return_intermediate=True):
    # NOTE: the reference's `sampling_locations / src_valid_ratios[:, None, None, None, :, :]`
    # right-aligned broadcast is only well-formed when n_points == n_levels (IDOL default 4/4).
    assert n_points == n_levels, "reference broadcast requires n_points == n_levels"

    prepared = [_prepare_layer_params(p) for p in layer_params]
    src_bf = src.astype(jnp.bfloat16)   # cast once; reused by every layer's value projection

    output = tgt
    intermediate = []
    intermediate_reference_points = []
    intermediate_samples = []
    for _lid, p in enumerate(prepared):
        if reference_points.shape[-1] == 4:
            reference_points_input = (reference_points[:, :, None]
                                      * jnp.concatenate([src_valid_ratios, src_valid_ratios], -1)[:, None])
        else:
            assert reference_points.shape[-1] == 2
            reference_points_input = reference_points[:, :, None] * src_valid_ratios[:, None]

        output, sampling_locations, attention_weights = decoder_layer_forward(
            p, output, query_pos, reference_points_input, src_bf,
            src_spatial_shapes, src_level_start_index, n_heads, n_levels, n_points,
            src_padding_mask)

        N, Len_q = sampling_locations.shape[:2]
        sampling_locations = sampling_locations / src_valid_ratios[:, None, None, None, :, :]
        weights_flat = attention_weights.reshape(N, Len_q, -1)
        samples_flat = sampling_locations.reshape(N, Len_q, -1, 2)
        # TODO(synk): top-k stays in plain JAX (sorting network is not a clean Pallas fit).
        top_weights, top_idx = jax.lax.top_k(weights_flat, 30)
        samples_keep = jnp.take_along_axis(
            samples_flat, jnp.broadcast_to(top_idx[..., None], top_idx.shape + (2,)), axis=2)

        # self.bbox_embed is None in __init__ -> bbox refinement branch skipped.
        if return_intermediate:
            intermediate.append(output)
            intermediate_reference_points.append(reference_points)
            intermediate_samples.append(samples_keep)

    if return_intermediate:
        return (jnp.stack(intermediate),
                jnp.stack(intermediate_reference_points),
                jnp.stack(intermediate_samples))
    return output, reference_points


# --------------------------------------------------------------------------------------
# Deterministic parameter init (synthetic; no checkpoint loading)
# --------------------------------------------------------------------------------------
def init_layer_params(key, d_model, d_ffn, n_heads, n_levels, n_points):
    D = d_model
    ks = jax.random.split(key, 9)

    def w(k, shape, scale=0.05):
        return jax.random.normal(k, shape, jnp.float32) * scale

    return dict(
        sa_in_w=w(ks[0], (D, 3 * D)), sa_in_b=jnp.zeros((3 * D,), jnp.float32),
        sa_out_w=w(ks[1], (D, D)), sa_out_b=jnp.zeros((D,), jnp.float32),
        norm2_g=jnp.ones((D,), jnp.float32), norm2_b=jnp.zeros((D,), jnp.float32),
        ca_value_w=w(ks[2], (D, D)), ca_value_b=jnp.zeros((D,), jnp.float32),
        ca_off_w=w(ks[3], (D, n_heads * n_levels * n_points * 2), 0.01),
        ca_off_b=w(ks[4], (n_heads * n_levels * n_points * 2,), 0.1),
        ca_attw_w=w(ks[5], (D, n_heads * n_levels * n_points), 0.05),
        ca_attw_b=jnp.zeros((n_heads * n_levels * n_points,), jnp.float32),
        ca_out_w=w(ks[6], (D, D)), ca_out_b=jnp.zeros((D,), jnp.float32),
        norm1_g=jnp.ones((D,), jnp.float32), norm1_b=jnp.zeros((D,), jnp.float32),
        ffn_w1=w(ks[7], (D, d_ffn)), ffn_b1=jnp.zeros((d_ffn,), jnp.float32),
        ffn_w2=w(ks[8], (d_ffn, D)), ffn_b2=jnp.zeros((D,), jnp.float32),
        norm3_g=jnp.ones((D,), jnp.float32), norm3_b=jnp.zeros((D,), jnp.float32),
    )


if __name__ == "__main__":
    key = jax.random.PRNGKey(0)
    N, Lq, D, d_ffn = 2, 8, 32, 64
    # IDOL / Deformable-DETR defaults: 4 levels, 4 points (required so the reference's
    # sampling_locations / valid_ratios broadcast is well formed, exactly as in PyTorch).
    n_heads, n_levels, n_points = 4, 4, 4
    num_layers = 2
    spatial_shapes = ((8, 8), (4, 4), (2, 2), (2, 2))   # per-level (H_l, W_l)
    level_start_index = (0, 64, 80, 84)
    S = sum(h * w for h, w in spatial_shapes)           # 88

    k_tgt, k_pos, k_src, k_ref, k_vr, k_params = jax.random.split(key, 6)
    tgt = jax.random.normal(k_tgt, (N, Lq, D), jnp.float32)
    query_pos = jax.random.normal(k_pos, (N, Lq, D), jnp.float32)
    src = jax.random.normal(k_src, (N, S, D), jnp.float32)
    reference_points = jax.nn.sigmoid(jax.random.normal(k_ref, (N, Lq, 2), jnp.float32))
    src_valid_ratios = jax.random.uniform(k_vr, (N, n_levels, 2), jnp.float32, 0.7, 1.0)

    layer_keys = jax.random.split(k_params, num_layers)
    layer_params = [init_layer_params(lk, D, d_ffn, n_heads, n_levels, n_points)
                    for lk in layer_keys]

    out = deformable_transformer_decoder_forward(
        layer_params, tgt, reference_points, src,
        spatial_shapes, level_start_index, src_valid_ratios,
        query_pos=query_pos, src_padding_mask=None,
        n_heads=n_heads, n_levels=n_levels, n_points=n_points,
        return_intermediate=True)

    for o in out:
        jax.block_until_ready(o)

    # shapes: (num_layers, N, Lq, D), (num_layers, N, Lq, 2), (num_layers, N, Lq, 30, 2)
    assert out[0].shape == (num_layers, N, Lq, D)
    assert out[1].shape == (num_layers, N, Lq, 2)
    assert out[2].shape == (num_layers, N, Lq, 30, 2)
    assert all(bool(jnp.all(jnp.isfinite(o))) for o in out)
    print("KERNEL_OK")
</pallas_src>

<mosaic_0001>
module attributes {stable_mosaic.version = 11 : i64} {
  func.func @_sa_caq_kernel(%arg0: i32, %arg1: memref<1x8x32xf32, #tpu.memory_space<vmem>>, %arg2: memref<1x8x32xf32, #tpu.memory_space<vmem>>, %arg3: memref<32x96xbf16, #tpu.memory_space<vmem>>, %arg4: memref<1x96xf32, #tpu.memory_space<vmem>>, %arg5: memref<32x32xbf16, #tpu.memory_space<vmem>>, %arg6: memref<1x32xf32, #tpu.memory_space<vmem>>, %arg7: memref<1x32xf32, #tpu.memory_space<vmem>>, %arg8: memref<1x32xf32, #tpu.memory_space<vmem>>, %arg9: memref<32x192xbf16, #tpu.memory_space<vmem>>, %arg10: memref<1x192xf32, #tpu.memory_space<vmem>>, %arg11: memref<1x8x32xf32, #tpu.memory_space<vmem>>, %arg12: memref<1x8x192xf32, #tpu.memory_space<vmem>>, %arg13: memref<8x32xf32, #tpu.memory_space<vmem>>) attributes {dimension_semantics = [#tpu.dimension_semantics<parallel>], iteration_bounds = array<i64: 2>, scalar_prefetch = 0 : i64, scratch_operands = 1 : i64, tpu.core_type = #tpu.core_type<tc>, window_params = [{transform_indices = @transform_0, window_bounds = array<i64: 1, 8, 32>}, {transform_indices = @transform_1, window_bounds = array<i64: 1, 8, 32>}, {pipeline_mode = #tpu.pipeline_mode<synchronous>, transform_indices = @transform_2, window_bounds = array<i64: 32, 96>}, {pipeline_mode = #tpu.pipeline_mode<synchronous>, transform_indices = @transform_3, window_bounds = array<i64: 1, 96>}, {pipeline_mode = #tpu.pipeline_mode<synchronous>, transform_indices = @transform_4, window_bounds = array<i64: 32, 32>}, {pipeline_mode = #tpu.pipeline_mode<synchronous>, transform_indices = @transform_5, window_bounds = array<i64: 1, 32>}, {pipeline_mode = #tpu.pipeline_mode<synchronous>, transform_indices = @transform_6, window_bounds = array<i64: 1, 32>}, {pipeline_mode = #tpu.pipeline_mode<synchronous>, transform_indices = @transform_7, window_bounds = array<i64: 1, 32>}, {pipeline_mode = #tpu.pipeline_mode<synchronous>, transform_indices = @transform_8, window_bounds = array<i64: 32, 192>}, {pipeline_mode = #tpu.pipeline_mode<synchronous>, transform_indices = @transform_9, window_bounds = array<i64: 1, 192>}, {transform_indices = @transform_10, window_bounds = array<i64: 1, 8, 32>}, {transform_indices = @transform_11, window_bounds = array<i64: 1, 8, 192>}]} {
    %c0 = arith.constant 0 : index
    %c0_0 = arith.constant 0 : index
    %c0_1 = arith.constant 0 : index
    %0 = vector.load %arg1[%c0, %c0_0, %c0_1] : memref<1x8x32xf32, #tpu.memory_space<vmem>>, vector<1x8x32xf32>
    %1 = vector.shape_cast %0 : vector<1x8x32xf32> to vector<8x32xf32>
    %c0_2 = arith.constant 0 : index
    %c0_3 = arith.constant 0 : index
    %c0_4 = arith.constant 0 : index
    %2 = vector.load %arg2[%c0_2, %c0_3, %c0_4] : memref<1x8x32xf32, #tpu.memory_space<vmem>>, vector<1x8x32xf32>
    %3 = vector.shape_cast %2 : vector<1x8x32xf32> to vector<8x32xf32>
    %4 = arith.addf %1, %3 : vector<8x32xf32>
    %5 = arith.truncf %4 : vector<8x32xf32> to vector<8x32xbf16>
    %6 = arith.truncf %1 : vector<8x32xf32> to vector<8x32xbf16>
    %c0_5 = arith.constant 0 : index
    %c0_6 = arith.constant 0 : index
    %7 = vector.load %arg3[%c0_5, %c0_6] : memref<32x96xbf16, #tpu.memory_space<vmem>>, vector<32x96xbf16>
    %c0_7 = arith.constant 0 : index
    %c0_8 = arith.constant 0 : index
    %8 = vector.load %arg4[%c0_7, %c0_8] : memref<1x96xf32, #tpu.memory_space<vmem>>, vector<1x96xf32>
    %9 = vector.extract_strided_slice %7 {offsets = [0, 0], sizes = [32, 64], strides = [1, 1]} : vector<32x96xbf16> to vector<32x64xbf16>
    %cst = arith.constant dense<0.000000e+00> : vector<8x64xf32>
    %10 = tpu.matmul %5, %9, %cst {dimension_numbers = #tpu.dot_dimension_numbers<[1], [0], [0], [1], [0, 0, 1, 1], [], []>} : vector<8x32xbf16>, vector<32x64xbf16>, vector<8x64xf32> -> vector<8x64xf32>
    %11 = vector.extract_strided_slice %8 {offsets = [0, 0], sizes = [1, 64], strides = [1, 1]} : vector<1x96xf32> to vector<1x64xf32>
    %12 = vector.broadcast %11 : vector<1x64xf32> to vector<8x64xf32>
    %13 = arith.addf %10, %12 : vector<8x64xf32>
    %14 = vector.extract_strided_slice %7 {offsets = [0, 64], sizes = [32, 32], strides = [1, 1]} : vector<32x96xbf16> to vector<32x32xbf16>
    %cst_9 = arith.constant dense<0.000000e+00> : vector<8x32xf32>
    %15 = tpu.matmul %6, %14, %cst_9 {dimension_numbers = #tpu.dot_dimension_numbers<[1], [0], [0], [1], [0, 0, 1, 1], [], []>} : vector<8x32xbf16>, vector<32x32xbf16>, vector<8x32xf32> -> vector<8x32xf32>
    %16 = vector.extract_strided_slice %8 {offsets = [0, 64], sizes = [1, 32], strides = [1, 1]} : vector<1x96xf32> to vector<1x32xf32>
    %17 = vector.broadcast %16 : vector<1x32xf32> to vector<8x32xf32>
    %18 = arith.addf %15, %17 : vector<8x32xf32>
    %19 = vector.extract_strided_slice %13 {offsets = [0, 0], sizes = [8, 32], strides = [1, 1]} : vector<8x64xf32> to vector<8x32xf32>
    %cst_10 = arith.constant 0.353553385 : f32
    %20 = vector.broadcast %cst_10 : f32 to vector<8x32xf32>
    %21 = arith.mulf %19, %20 : vector<8x32xf32>
    %22 = arith.truncf %21 : vector<8x32xf32> to vector<8x32xbf16>
    %23 = vector.extract_strided_slice %13 {offsets = [0, 32], sizes = [8, 32], strides = [1, 1]} : vector<8x64xf32> to vector<8x32xf32>
    %24 = arith.truncf %23 : vector<8x32xf32> to vector<8x32xbf16>
    %25 = arith.truncf %18 : vector<8x32xf32> to vector<8x32xbf16>
    %26 = vector.extract_strided_slice %22 {offsets = [0, 0], sizes = [8, 8], strides = [1, 1]} : vector<8x32xbf16> to vector<8x8xbf16>
    %27 = vector.extract_strided_slice %24 {offsets = [0, 0], sizes = [8, 8], strides = [1, 1]} : vector<8x32xbf16> to vector<8x8xbf16>
    %cst_11 = arith.constant dense<0.000000e+00> : vector<8x8xf32>
    %28 = tpu.matmul %26, %27, %cst_11 {dimension_numbers = #tpu.dot_dimension_numbers<[1], [1], [0], [0], [0, 0, 1, 0], [], []>} : vector<8x8xbf16>, vector<8x8xbf16>, vector<8x8xf32> -> vector<8x8xf32>
    %cst_12 = arith.constant dense<0xFF800000> : vector<8xf32>
    %29 = vector.multi_reduction <maximumf>, %28, %cst_12 [1] : vector<8x8xf32> to vector<8xf32>
    %30 = vector.shape_cast %29 : vector<8xf32> to vector<8x1xf32>
    %31 = vector.broadcast %30 : vector<8x1xf32> to vector<8x8xf32>
    %32 = arith.subf %28, %31 : vector<8x8xf32>
    %33 = math.exp %32 : vector<8x8xf32>
    %cst_13 = arith.constant dense<0.000000e+00> : vector<8xf32>
    %34 = vector.multi_reduction <add>, %33, %cst_13 [1] : vector<8x8xf32> to vector<8xf32>
    %35 = vector.shape_cast %34 : vector<8xf32> to vector<8x1xf32>
    %36 = tpu.reciprocal %35 {approx = true} : vector<8x1xf32> -> vector<8x1xf32>
    %37 = vector.broadcast %36 : vector<8x1xf32> to vector<8x8xf32>
    %38 = arith.mulf %33, %37 : vector<8x8xf32>
    %39 = arith.truncf %38 : vector<8x8xf32> to vector<8x8xbf16>
    %40 = vector.extract_strided_slice %25 {offsets = [0, 0], sizes = [8, 8], strides = [1, 1]} : vector<8x32xbf16> to vector<8x8xbf16>
    %cst_14 = arith.constant dense<0.000000e+00> : vector<8x8xf32>
    %41 = tpu.matmul %39, %40, %cst_14 {dimension_numbers = #tpu.dot_dimension_numbers<[1], [0], [0], [1], [0, 0, 1, 1], [], []>} : vector<8x8xbf16>, vector<8x8xbf16>, vector<8x8xf32> -> vector<8x8xf32>
    %c0_15 = arith.constant 0 : index
    %c0_16 = arith.constant 0 : index
    %42 = vector.load %arg13[%c0_15, %c0_16] : memref<8x32xf32, #tpu.memory_space<vmem>>, vector<8x8xf32>
    tpu.vector_store %arg13[%c0_15, %c0_16], %41 {strides = array<i32>} : memref<8x32xf32, #tpu.memory_space<vmem>>, vector<8x8xf32>,
    %43 = vector.extract_strided_slice %22 {offsets = [0, 8], sizes = [8, 8], strides = [1, 1]} : vector<8x32xbf16> to vector<8x8xbf16>
    %44 = vector.extract_strided_slice %24 {offsets = [0, 8], sizes = [8, 8], strides = [1, 1]} : vector<8x32xbf16> to vector<8x8xbf16>
    %cst_17 = arith.constant dense<0.000000e+00> : vector<8x8xf32>
    %45 = tpu.matmul %43, %44, %cst_17 {dimension_numbers = #tpu.dot_dimension_numbers<[1], [1], [0], [0], [0, 0, 1, 0], [], []>} : vector<8x8xbf16>, vector<8x8xbf16>, vector<8x8xf32> -> vector<8x8xf32>
    %cst_18 = arith.constant dense<0xFF800000> : vector<8xf32>
    %46 = vector.multi_reduction <maximumf>, %45, %cst_18 [1] : vector<8x8xf32> to vector<8xf32>
    %47 = vector.shape_cast %46 : vector<8xf32> to vector<8x1xf32>
    %48 = vector.broadcast %47 : vector<8x1xf32> to vector<8x8xf32>
    %49 = arith.subf %45, %48 : vector<8x8xf32>
    %50 = math.exp %49 : vector<8x8xf32>
    %cst_19 = arith.constant dense<0.000000e+00> : vector<8xf32>
    %51 = vector.multi_reduction <add>, %50, %cst_19 [1] : vector<8x8xf32> to vector<8xf32>
    %52 = vector.shape_cast %51 : vector<8xf32> to vector<8x1xf32>
    %53 = tpu.reciprocal %52 {approx = true} : vector<8x1xf32> -> vector<8x1xf32>
    %54 = vector.broadcast %53 : vector<8x1xf32> to vector<8x8xf32>
    %55 = arith.mulf %50, %54 : vector<8x8xf32>
    %56 = arith.truncf %55 : vector<8x8xf32> to vector<8x8xbf16>
    %57 = vector.extract_strided_slice %25 {offsets = [0, 8], sizes = [8, 8], strides = [1, 1]} : vector<8x32xbf16> to vector<8x8xbf16>
    %cst_20 = arith.constant dense<0.000000e+00> : vector<8x8xf32>
    %58 = tpu.matmul %56, %57, %cst_20 {dimension_numbers = #tpu.dot_dimension_numbers<[1], [0], [0], [1], [0, 0, 1, 1], [], []>} : vector<8x8xbf16>, vector<8x8xbf16>, vector<8x8xf32> -> vector<8x8xf32>
    %c0_21 = arith.constant 0 : index
    %c8 = arith.constant 8 : index
    %59 = vector.load %arg13[%c0_21, %c8] : memref<8x32xf32, #tpu.memory_space<vmem>>, vector<8x8xf32>
    tpu.vector_store %arg13[%c0_21, %c8], %58 {strides = array<i32>} : memref<8x32xf32, #tpu.memory_space<vmem>>, vector<8x8xf32>,
    %60 = vector.extract_strided_slice %22 {offsets = [0, 16], sizes = [8, 8], strides = [1, 1]} : vector<8x32xbf16> to vector<8x8xbf16>
    %61 = vector.extract_strided_slice %24 {offsets = [0, 16], sizes = [8, 8], strides = [1, 1]} : vector<8x32xbf16> to vector<8x8xbf16>
    %cst_22 = arith.constant dense<0.000000e+00> : vector<8x8xf32>
    %62 = tpu.matmul %60, %61, %cst_22 {dimension_numbers = #tpu.dot_dimension_numbers<[1], [1], [0], [0], [0, 0, 1, 0], [], []>} : vector<8x8xbf16>, vector<8x8xbf16>, vector<8x8xf32> -> vector<8x8xf32>
    %cst_23 = arith.constant dense<0xFF800000> : vector<8xf32>
    %63 = vector.multi_reduction <maximumf>, %62, %cst_23 [1] : vector<8x8xf32> to vector<8xf32>
    %64 = vector.shape_cast %63 : vector<8xf32> to vector<8x1xf32>
    %65 = vector.broadcast %64 : vector<8x1xf32> to vector<8x8xf32>
    %66 = arith.subf %62, %65 : vector<8x8xf32>
    %67 = math.exp %66 : vector<8x8xf32>
    %cst_24 = arith.constant dense<0.000000e+00> : vector<8xf32>
    %68 = vector.multi_reduction <add>, %67, %cst_24 [1] : vector<8x8xf32> to vector<8xf32>
    %69 = vector.shape_cast %68 : vector<8xf32> to vector<8x1xf32>
    %70 = tpu.reciprocal %69 {approx = true} : vector<8x1xf32> -> vector<8x1xf32>
    %71 = vector.broadcast %70 : vector<8x1xf32> to vector<8x8xf32>
    %72 = arith.mulf %67, %71 : vector<8x8xf32>
    %73 = arith.truncf %72 : vector<8x8xf32> to vector<8x8xbf16>
    %74 = vector.extract_strided_slice %25 {offsets = [0, 16], sizes = [8, 8], strides = [1, 1]} : vector<8x32xbf16> to vector<8x8xbf16>
    %cst_25 = arith.constant dense<0.000000e+00> : vector<8x8xf32>
    %75 = tpu.matmul %73, %74, %cst_25 {dimension_numbers = #tpu.dot_dimension_numbers<[1], [0], [0], [1], [0, 0, 1, 1], [], []>} : vector<8x8xbf16>, vector<8x8xbf16>, vector<8x8xf32> -> vector<8x8xf32>
    %c0_26 = arith.constant 0 : index
    %c16 = arith.constant 16 : index
    %76 = vector.load %arg13[%c0_26, %c16] : memref<8x32xf32, #tpu.memory_space<vmem>>, vector<8x8xf32>
    tpu.vector_store %arg13[%c0_26, %c16], %75 {strides = array<i32>} : memref<8x32xf32, #tpu.memory_space<vmem>>, vector<8x8xf32>,
    %77 = vector.extract_strided_slice %22 {offsets = [0, 24], sizes = [8, 8], strides = [1, 1]} : vector<8x32xbf16> to vector<8x8xbf16>
    %78 = vector.extract_strided_slice %24 {offsets = [0, 24], sizes = [8, 8], strides = [1, 1]} : vector<8x32xbf16> to vector<8x8xbf16>
    %cst_27 = arith.constant dense<0.000000e+00> : vector<8x8xf32>
    %79 = tpu.matmul %77, %78, %cst_27 {dimension_numbers = #tpu.dot_dimension_numbers<[1], [1], [0], [0], [0, 0, 1, 0], [], []>} : vector<8x8xbf16>, vector<8x8xbf16>, vector<8x8xf32> -> vector<8x8xf32>
    %cst_28 = arith.constant dense<0xFF800000> : vector<8xf32>
    %80 = vector.multi_reduction <maximumf>, %79, %cst_28 [1] : vector<8x8xf32> to vector<8xf32>
    %81 = vector.shape_cast %80 : vector<8xf32> to vector<8x1xf32>
    %82 = vector.broadcast %81 : vector<8x1xf32> to vector<8x8xf32>
    %83 = arith.subf %79, %82 : vector<8x8xf32>
    %84 = math.exp %83 : vector<8x8xf32>
    %cst_29 = arith.constant dense<0.000000e+00> : vector<8xf32>
    %85 = vector.multi_reduction <add>, %84, %cst_29 [1] : vector<8x8xf32> to vector<8xf32>
    %86 = vector.shape_cast %85 : vector<8xf32> to vector<8x1xf32>
    %87 = tpu.reciprocal %86 {approx = true} : vector<8x1xf32> -> vector<8x1xf32>
    %88 = vector.broadcast %87 : vector<8x1xf32> to vector<8x8xf32>
    %89 = arith.mulf %84, %88 : vector<8x8xf32>
    %90 = arith.truncf %89 : vector<8x8xf32> to vector<8x8xbf16>
    %91 = vector.extract_strided_slice %25 {offsets = [0, 24], sizes = [8, 8], strides = [1, 1]} : vector<8x32xbf16> to vector<8x8xbf16>
    %cst_30 = arith.constant dense<0.000000e+00> : vector<8x8xf32>
    %92 = tpu.matmul %90, %91, %cst_30 {dimension_numbers = #tpu.dot_dimension_numbers<[1], [0], [0], [1], [0, 0, 1, 1], [], []>} : vector<8x8xbf16>, vector<8x8xbf16>, vector<8x8xf32> -> vector<8x8xf32>
    %c0_31 = arith.constant 0 : index
    %c24 = arith.constant 24 : index
    %93 = vector.load %arg13[%c0_31, %c24] : memref<8x32xf32, #tpu.memory_space<vmem>>, vector<8x8xf32>
    tpu.vector_store %arg13[%c0_31, %c24], %92 {strides = array<i32>} : memref<8x32xf32, #tpu.memory_space<vmem>>, vector<8x8xf32>,
    %c0_32 = arith.constant 0 : index
    %c0_33 = arith.constant 0 : index
    %94 = vector.load %arg13[%c0_32, %c0_33] : memref<8x32xf32, #tpu.memory_space<vmem>>, vector<8x32xf32>
    %95 = arith.truncf %94 : vector<8x32xf32> to vector<8x32xbf16>
    %c0_34 = arith.constant 0 : index
    %c0_35 = arith.constant 0 : index
    %96 = vector.load %arg5[%c0_34, %c0_35] : memref<32x32xbf16, #tpu.memory_space<vmem>>, vector<32x32xbf16>
    %cst_36 = arith.constant dense<0.000000e+00> : vector<8x32xf32>
    %97 = tpu.matmul %95, %96, %cst_36 {dimension_numbers = #tpu.dot_dimension_numbers<[1], [0], [0], [1], [0, 0, 1, 1], [], []>} : vector<8x32xbf16>, vector<32x32xbf16>, vector<8x32xf32> -> vector<8x32xf32>
    %c0_37 = arith.constant 0 : index
    %c0_38 = arith.constant 0 : index
    %98 = vector.load %arg6[%c0_37, %c0_38] : memref<1x32xf32, #tpu.memory_space<vmem>>, vector<1x32xf32>
    %99 = vector.broadcast %98 : vector<1x32xf32> to vector<8x32xf32>
    %100 = arith.addf %97, %99 : vector<8x32xf32>
    %101 = arith.addf %1, %100 : vector<8x32xf32>
    %c0_39 = arith.constant 0 : index
    %c0_40 = arith.constant 0 : index
    %102 = vector.load %arg7[%c0_39, %c0_40] : memref<1x32xf32, #tpu.memory_space<vmem>>, vector<1x32xf32>
    %c0_41 = arith.constant 0 : index
    %c0_42 = arith.constant 0 : index
    %103 = vector.load %arg8[%c0_41, %c0_42] : memref<1x32xf32, #tpu.memory_space<vmem>>, vector<1x32xf32>
    %cst_43 = arith.constant dense<0.000000e+00> : vector<8xf32>
    %104 = vector.multi_reduction <add>, %101, %cst_43 [1] : vector<8x32xf32> to vector<8xf32>
    %105 = vector.shape_cast %104 : vector<8xf32> to vector<8x1xf32>
    %cst_44 = arith.constant 3.200000e+01 : f32
    %106 = vector.broadcast %cst_44 : f32 to vector<8x1xf32>
    %107 = arith.divf %105, %106 : vector<8x1xf32>
    %108 = vector.broadcast %107 : vector<8x1xf32> to vector<8x32xf32>
    %109 = arith.subf %101, %108 : vector<8x32xf32>
    %110 = arith.mulf %109, %109 : vector<8x32xf32>
    %cst_45 = arith.constant dense<0.000000e+00> : vector<8xf32>
    %111 = vector.multi_reduction <add>, %110, %cst_45 [1] : vector<8x32xf32> to vector<8xf32>
    %112 = vector.shape_cast %111 : vector<8xf32> to vector<8x1xf32>
    %cst_46 = arith.constant 3.200000e+01 : f32
    %113 = vector.broadcast %cst_46 : f32 to vector<8x1xf32>
    %114 = arith.divf %112, %113 : vector<8x1xf32>
    %cst_47 = arith.constant 9.99999974E-6 : f32
    %115 = vector.broadcast %cst_47 : f32 to vector<8x1xf32>
    %116 = arith.addf %114, %115 : vector<8x1xf32>
    %117 = math.rsqrt %116 : vector<8x1xf32>
    %118 = vector.broadcast %117 : vector<8x1xf32> to vector<8x32xf32>
    %119 = arith.mulf %109, %118 : vector<8x32xf32>
    %120 = vector.broadcast %102 : vector<1x32xf32> to vector<8x32xf32>
    %121 = arith.mulf %119, %120 : vector<8x32xf32>
    %122 = vector.broadcast %103 : vector<1x32xf32> to vector<8x32xf32>
    %123 = arith.addf %121, %122 : vector<8x32xf32>
    %c0_48 = arith.constant 0 : index
    %c0_49 = arith.constant 0 : index
    %c0_50 = arith.constant 0 : index
    %124 = vector.load %arg11[%c0_48, %c0_49, %c0_50] : memref<1x8x32xf32, #tpu.memory_space<vmem>>, vector<1x8x32xf32>
    %125 = vector.shape_cast %124 : vector<1x8x32xf32> to vector<8x32xf32>
    %126 = vector.shape_cast %123 : vector<8x32xf32> to vector<1x8x32xf32>
    tpu.vector_store %arg11[%c0_48, %c0_49, %c0_50], %126 {strides = array<i32>} : memref<1x8x32xf32, #tpu.memory_space<vmem>>, vector<1x8x32xf32>,
    %127 = arith.addf %123, %3 : vector<8x32xf32>
    %128 = arith.truncf %127 : vector<8x32xf32> to vector<8x32xbf16>
    %c0_51 = arith.constant 0 : index
    %c0_52 = arith.constant 0 : index
    %129 = vector.load %arg9[%c0_51, %c0_52] : memref<32x192xbf16, #tpu.memory_space<vmem>>, vector<32x192xbf16>
    %cst_53 = arith.constant dense<0.000000e+00> : vector<8x192xf32>
    %130 = tpu.matmul %128, %129, %cst_53 {dimension_numbers = #tpu.dot_dimension_numbers<[1], [0], [0], [1], [0, 0, 1, 1], [], []>} : vector<8x32xbf16>, vector<32x192xbf16>, vector<8x192xf32> -> vector<8x192xf32>
    %c0_54 = arith.constant 0 : index
    %c0_55 = arith.constant 0 : index
    %131 = vector.load %arg10[%c0_54, %c0_55] : memref<1x192xf32, #tpu.memory_space<vmem>>, vector<1x192xf32>
    %132 = vector.broadcast %131 : vector<1x192xf32> to vector<8x192xf32>
    %133 = arith.addf %130, %132 : vector<8x192xf32>
    %134 = vector.extract_strided_slice %133 {offsets = [0, 0], sizes = [8, 128], strides = [1, 1]} : vector<8x192xf32> to vector<8x128xf32>
    %c0_56 = arith.constant 0 : index
    %c0_57 = arith.constant 0 : index
    %c0_58 = arith.constant 0 : index
    %135 = vector.load %arg12[%c0_56, %c0_57, %c0_58] : memref<1x8x192xf32, #tpu.memory_space<vmem>>, vector<1x8x128xf32>
    %136 = vector.shape_cast %135 : vector<1x8x128xf32> to vector<8x128xf32>
    %137 = vector.shape_cast %134 : vector<8x128xf32> to vector<1x8x128xf32>
    tpu.vector_store %arg12[%c0_56, %c0_57, %c0_58], %137 {strides = array<i32>} : memref<1x8x192xf32, #tpu.memory_space<vmem>>, vector<1x8x128xf32>,
    %138 = vector.extract_strided_slice %133 {offsets = [0, 128], sizes = [8, 16], strides = [1, 1]} : vector<8x192xf32> to vector<8x16xf32>
    %cst_59 = arith.constant dense<0xFF800000> : vector<8xf32>
    %139 = vector.multi_reduction <maximumf>, %138, %cst_59 [1] : vector<8x16xf32> to vector<8xf32>
    %140 = vector.shape_cast %139 : vector<8xf32> to vector<8x1xf32>
    %141 = vector.broadcast %140 : vector<8x1xf32> to vector<8x16xf32>
    %142 = arith.subf %138, %141 : vector<8x16xf32>
    %143 = math.exp %142 : vector<8x16xf32>
    %cst_60 = arith.constant dense<0.000000e+00> : vector<8xf32>
    %144 = vector.multi_reduction <add>, %143, %cst_60 [1] : vector<8x16xf32> to vector<8xf32>
    %145 = vector.shape_cast %144 : vector<8xf32> to vector<8x1xf32>
    %146 = tpu.reciprocal %145 {approx = true} : vector<8x1xf32> -> vector<8x1xf32>
    %147 = vector.broadcast %146 : vector<8x1xf32> to vector<8x16xf32>
    %148 = arith.mulf %143, %147 : vector<8x16xf32>
    %c0_61 = arith.constant 0 : index
    %c0_62 = arith.constant 0 : index
    %c128 = arith.constant 128 : index
    %149 = vector.load %arg12[%c0_61, %c0_62, %c128] : memref<1x8x192xf32, #tpu.memory_space<vmem>>, vector<1x8x16xf32>
    %150 = vector.shape_cast %149 : vector<1x8x16xf32> to vector<8x16xf32>
    %151 = vector.shape_cast %148 : vector<8x16xf32> to vector<1x8x16xf32>
    tpu.vector_store %arg12[%c0_61, %c0_62, %c128], %151 {strides = array<i32>} : memref<1x8x192xf32, #tpu.memory_space<vmem>>, vector<1x8x16xf32>,
    %152 = vector.extract_strided_slice %133 {offsets = [0, 144], sizes = [8, 16], strides = [1, 1]} : vector<8x192xf32> to vector<8x16xf32>
    %cst_63 = arith.constant dense<0xFF800000> : vector<8xf32>
    %153 = vector.multi_reduction <maximumf>, %152, %cst_63 [1] : vector<8x16xf32> to vector<8xf32>
    %154 = vector.shape_cast %153 : vector<8xf32> to vector<8x1xf32>
    %155 = vector.broadcast %154 : vector<8x1xf32> to vector<8x16xf32>
    %156 = arith.subf %152, %155 : vector<8x16xf32>
    %157 = math.exp %156 : vector<8x16xf32>
    %cst_64 = arith.constant dense<0.000000e+00> : vector<8xf32>
    %158 = vector.multi_reduction <add>, %157, %cst_64 [1] : vector<8x16xf32> to vector<8xf32>
    %159 = vector.shape_cast %158 : vector<8xf32> to vector<8x1xf32>
    %160 = tpu.reciprocal %159 {approx = true} : vector<8x1xf32> -> vector<8x1xf32>
    %161 = vector.broadcast %160 : vector<8x1xf32> to vector<8x16xf32>
    %162 = arith.mulf %157, %161 : vector<8x16xf32>
    %c0_65 = arith.constant 0 : index
    %c0_66 = arith.constant 0 : index
    %c144 = arith.constant 144 : index
    %163 = vector.load %arg12[%c0_65, %c0_66, %c144] : memref<1x8x192xf32, #tpu.memory_space<vmem>>, vector<1x8x16xf32>
    %164 = vector.shape_cast %163 : vector<1x8x16xf32> to vector<8x16xf32>
    %165 = vector.shape_cast %162 : vector<8x16xf32> to vector<1x8x16xf32>
    tpu.vector_store %arg12[%c0_65, %c0_66, %c144], %165 {strides = array<i32>} : memref<1x8x192xf32, #tpu.memory_space<vmem>>, vector<1x8x16xf32>,
    %166 = vector.extract_strided_slice %133 {offsets = [0, 160], sizes = [8, 16], strides = [1, 1]} : vector<8x192xf32> to vector<8x16xf32>
    %cst_67 = arith.constant dense<0xFF800000> : vector<8xf32>
    %167 = vector.multi_reduction <maximumf>, %166, %cst_67 [1] : vector<8x16xf32> to vector<8xf32>
    %168 = vector.shape_cast %167 : vector<8xf32> to vector<8x1xf32>
    %169 = vector.broadcast %168 : vector<8x1xf32> to vector<8x16xf32>
    %170 = arith.subf %166, %169 : vector<8x16xf32>
    %171 = math.exp %170 : vector<8x16xf32>
    %cst_68 = arith.constant dense<0.000000e+00> : vector<8xf32>
    %172 = vector.multi_reduction <add>, %171, %cst_68 [1] : vector<8x16xf32> to vector<8xf32>
    %173 = vector.shape_cast %172 : vector<8xf32> to vector<8x1xf32>
    %174 = tpu.reciprocal %173 {approx = true} : vector<8x1xf32> -> vector<8x1xf32>
    %175 = vector.broadcast %174 : vector<8x1xf32> to vector<8x16xf32>
    %176 = arith.mulf %171, %175 : vector<8x16xf32>
    %c0_69 = arith.constant 0 : index
    %c0_70 = arith.constant 0 : index
    %c160 = arith.constant 160 : index
    %177 = vector.load %arg12[%c0_69, %c0_70, %c160] : memref<1x8x192xf32, #tpu.memory_space<vmem>>, vector<1x8x16xf32>
    %178 = vector.shape_cast %177 : vector<1x8x16xf32> to vector<8x16xf32>
    %179 = vector.shape_cast %176 : vector<8x16xf32> to vector<1x8x16xf32>
    tpu.vector_store %arg12[%c0_69, %c0_70, %c160], %179 {strides = array<i32>} : memref<1x8x192xf32, #tpu.memory_space<vmem>>, vector<1x8x16xf32>,
    %180 = vector.extract_strided_slice %133 {offsets = [0, 176], sizes = [8, 16], strides = [1, 1]} : vector<8x192xf32> to vector<8x16xf32>
    %cst_71 = arith.constant dense<0xFF800000> : vector<8xf32>
    %181 = vector.multi_reduction <maximumf>, %180, %cst_71 [1] : vector<8x16xf32> to vector<8xf32>
    %182 = vector.shape_cast %181 : vector<8xf32> to vector<8x1xf32>
    %183 = vector.broadcast %182 : vector<8x1xf32> to vector<8x16xf32>
    %184 = arith.subf %180, %183 : vector<8x16xf32>
    %185 = math.exp %184 : vector<8x16xf32>
    %cst_72 = arith.constant dense<0.000000e+00> : vector<8xf32>
    %186 = vector.multi_reduction <add>, %185, %cst_72 [1] : vector<8x16xf32> to vector<8xf32>
    %187 = vector.shape_cast %186 : vector<8xf32> to vector<8x1xf32>
    %188 = tpu.reciprocal %187 {approx = true} : vector<8x1xf32> -> vector<8x1xf32>
    %189 = vector.broadcast %188 : vector<8x1xf32> to vector<8x16xf32>
    %190 = arith.mulf %185, %189 : vector<8x16xf32>
    %c0_73 = arith.constant 0 : index
    %c0_74 = arith.constant 0 : index
    %c176 = arith.constant 176 : index
    %191 = vector.load %arg12[%c0_73, %c0_74, %c176] : memref<1x8x192xf32, #tpu.memory_space<vmem>>, vector<1x8x16xf32>
    %192 = vector.shape_cast %191 : vector<1x8x16xf32> to vector<8x16xf32>
    %193 = vector.shape_cast %190 : vector<8x16xf32> to vector<1x8x16xf32>
    tpu.vector_store %arg12[%c0_73, %c0_74, %c176], %193 {strides = array<i32>} : memref<1x8x192xf32, #tpu.memory_space<vmem>>, vector<1x8x16xf32>,
    return
  }
  func.func @transform_0(%arg0: i32) -> (i32, i32, i32) {
    %c0_i32 = arith.constant 0 : i32
    %c0_i32_0 = arith.constant 0 : i32
    %c0_i32_1 = arith.constant 0 : i32
    return %arg0, %c0_i32, %c0_i32_0 : i32, i32, i32
  }
  func.func @transform_1(%arg0: i32) -> (i32, i32, i32) {
    %c0_i32 = arith.constant 0 : i32
    %c0_i32_0 = arith.constant 0 : i32
    %c0_i32_1 = arith.constant 0 : i32
    return %arg0, %c0_i32, %c0_i32_0 : i32, i32, i32
  }
  func.func @transform_2(%arg0: i32) -> (i32, i32) {
    %c0_i32 = arith.constant 0 : i32
    %c0_i32_0 = arith.constant 0 : i32
    %c0_i32_1 = arith.constant 0 : i32
    return %c0_i32, %c0_i32_0 : i32, i32
  }
  func.func @transform_3(%arg0: i32) -> (i32, i32) {
    %c0_i32 = arith.constant 0 : i32
    %c0_i32_0 = arith.constant 0 : i32
    %c0_i32_1 = arith.constant 0 : i32
    return %c0_i32, %c0_i32_0 : i32, i32
  }
  func.func @transform_4(%arg0: i32) -> (i32, i32) {
    %c0_i32 = arith.constant 0 : i32
    %c0_i32_0 = arith.constant 0 : i32
    %c0_i32_1 = arith.constant 0 : i32
    return %c0_i32, %c0_i32_0 : i32, i32
  }
  func.func @transform_5(%arg0: i32) -> (i32, i32) {
    %c0_i32 = arith.constant 0 : i32
    %c0_i32_0 = arith.constant 0 : i32
    %c0_i32_1 = arith.constant 0 : i32
    return %c0_i32, %c0_i32_0 : i32, i32
  }
  func.func @transform_6(%arg0: i32) -> (i32, i32) {
    %c0_i32 = arith.constant 0 : i32
    %c0_i32_0 = arith.constant 0 : i32
    %c0_i32_1 = arith.constant 0 : i32
    return %c0_i32, %c0_i32_0 : i32, i32
  }
  func.func @transform_7(%arg0: i32) -> (i32, i32) {
    %c0_i32 = arith.constant 0 : i32
    %c0_i32_0 = arith.constant 0 : i32
    %c0_i32_1 = arith.constant 0 : i32
    return %c0_i32, %c0_i32_0 : i32, i32
  }
  func.func @transform_8(%arg0: i32) -> (i32, i32) {
    %c0_i32 = arith.constant 0 : i32
    %c0_i32_0 = arith.constant 0 : i32
    %c0_i32_1 = arith.constant 0 : i32
    return %c0_i32, %c0_i32_0 : i32, i32
  }
  func.func @transform_9(%arg0: i32) -> (i32, i32) {
    %c0_i32 = arith.constant 0 : i32
    %c0_i32_0 = arith.constant 0 : i32
    %c0_i32_1 = arith.constant 0 : i32
    return %c0_i32, %c0_i32_0 : i32, i32
  }
  func.func @transform_10(%arg0: i32) -> (i32, i32, i32) {
    %c0_i32 = arith.constant 0 : i32
    %c0_i32_0 = arith.constant 0 : i32
    %c0_i32_1 = arith.constant 0 : i32
    return %arg0, %c0_i32, %c0_i32_0 : i32, i32, i32
  }
  func.func @transform_11(%arg0: i32) -> (i32, i32, i32) {
    %c0_i32 = arith.constant 0 : i32
    %c0_i32_0 = arith.constant 0 : i32
    %c0_i32_1 = arith.constant 0 : i32
    return %arg0, %c0_i32, %c0_i32_0 : i32, i32, i32
  }
}

</mosaic_0001>

<llo_original>
// kernel: tpu_custom_call.1
$region0: #{tpu_custom_call.1}
  #allocation0 [shape = 'u32[]', space=smem, size = 0x4, offset = 0x4, fixed_abs, tag = 'smem constant byte address 0x4 - core index']
  #allocation1 [shape = 'u32[144,128]{1,0:T(1,128)}', space=vmem, size = 0x12000, scoped, tag = 'internal scratch']
  #allocation2 [shape = 'f32[8,32]{1,0:T(8,128)}', space=vmem, size = 0x1000, scoped, tag = 'scratch operand']
  %s0 = inlined_call_operand.hbm [shape: f32[2,8,32], index: 0, kind: input, shape index: {}]
  %s1 = inlined_call_operand.hbm [shape: f32[2,8,32], index: 1, kind: input, shape index: {}]
  %s2 = inlined_call_operand.hbm [shape: bf16[32,96], index: 2, kind: input, shape index: {}]
  %s3 = inlined_call_operand.vmem [shape: f32[1,96], index: 3, kind: input, shape index: {}]
  %s4 = inlined_call_operand.hbm [shape: bf16[32,32], index: 4, kind: input, shape index: {}]
  %s5 = inlined_call_operand.vmem [shape: f32[1,32], index: 5, kind: input, shape index: {}]
  %s6 = inlined_call_operand.vmem [shape: f32[1,32], index: 6, kind: input, shape index: {}]
  %s7 = inlined_call_operand.vmem [shape: f32[1,32], index: 7, kind: input, shape index: {}]
  %s8 = inlined_call_operand.hbm [shape: bf16[32,192], index: 8, kind: input, shape index: {}]
  %s9 = inlined_call_operand.vmem [shape: f32[1,192], index: 9, kind: input, shape index: {}]
  %s10 = inlined_call_operand.hbm [shape: f32[2,8,32], index: 10, kind: output, shape index: {0}]
  %s11 = inlined_call_operand.hbm [shape: f32[2,8,192], index: 11, kind: output, shape index: {1}]
  %12 = xla_tuple %s10, %s11
  %s13 = sld [smem:[#allocation0]]
  $region101: #{tpu_custom_call.1} parent=0
    _
  %s15 = ssub.s32 1, %s13
  %s16 = scalar_select 0, %s15, %s13
  $region1: #{tpu_custom_call.1} parent=0
    #allocation3 [shape = 'u8[8192]{0}', space=vmem, size = 0x2000, scoped, tag = 'input window, operand 0']
    #allocation4 [shape = 's32[2]{0}', space=sflag, size = 0x8, scoped, tag = 'scoped memory for tpu_custom_call.1']
    #allocation5 [shape = 's32[2]{0}', space=sflag, size = 0x8, scoped, tag = 'scoped memory for tpu_custom_call.1']
    #allocation6 [shape = 'u8[8192]{0}', space=vmem, size = 0x2000, scoped, tag = 'input window, operand 1']
    #allocation7 [shape = 's32[2]{0}', space=sflag, size = 0x8, scoped, tag = 'scoped memory for tpu_custom_call.1']
    #allocation8 [shape = 'u8[8192]{0}', space=vmem, size = 0x2000, scoped, tag = 'input window, operand 2, single buffered']
    #allocation9 [shape = 'u8[8192]{0}', space=vmem, size = 0x2000, scoped, tag = 'input window, operand 4, single buffered']
    #allocation10 [shape = 's32[1]{0}', space=sflag, size = 0x4, scoped, tag = 'scoped memory for tpu_custom_call.1']
    #allocation11 [shape = 'u8[16384]{0}', space=vmem, size = 0x4000, scoped, tag = 'input window, operand 8, single buffered']
    #allocation12 [shape = 'u8[8192]{0}', space=vmem, size = 0x2000, scoped, tag = 'output window, operand 0']
    #allocation13 [shape = 'u8[16384]{0}', space=vmem, size = 0x4000, scoped, tag = 'output window, operand 1']
    #allocation14 [shape = 's32[2]{0}', space=sflag, size = 0x8, scoped, tag = 'scoped memory for tpu_custom_call.1']
    %17 = vsyncpa [#allocation4], 0
    %s18 = scalar_lea.sflag [#allocation4], 1
    %19 = vsyncpa %s18, 0
    %20 = vsyncpa [#allocation7], 0
    %s21 = scalar_lea.sflag [#allocation7], 1
    %22 = vsyncpa %s21, 0
    %23 = vsyncpa [#allocation10], 0
    %24 = vsyncpa [#allocation5], 0
    %s25 = scalar_lea.sflag [#allocation5], 1
    %26 = vsyncpa %s25, 0
    %27 = vsyncpa [#allocation14], 0
    %s28 = scalar_lea.sflag [#allocation14], 1
    %29 = vsyncpa %s28, 0
    loop: start=0, step=1, limit=4
    $region2: #{tpu_custom_call.1} parent=1 // loop_pre_header
      _
    $region3: #{tpu_custom_call.1} parent=1 // loop_header
      %s31 = sphi 0, %s35
      %p32 = scmp.ge.s32.totalorder %s31, 4
      %s41 = sphi 0, %s43
      %s44 = sphi 0, %s41
      %s45 = sphi 0, %s44
      %s61 = sphi 0, %s45
      %s67 = sphi 0, %s69
      %s70 = sphi 0, %s67
      %s71 = sphi 0, %s70
      %s87 = sphi 0, %s71
      %s91 = sphi 0, %s91
      %s93 = sphi 0, %s91
      %s94 = sphi 0, %s93
      %s108 = sphi 0, %s94
      %s112 = sphi 0, %s112
      %s114 = sphi 0, %s112
      %s115 = sphi 0, %s114
      %s129 = sphi 0, %s115
      %s133 = sphi 0, %s133
      %s135 = sphi 0, %s133
      %s136 = sphi 0, %s135
      %s150 = sphi 0, %s136
      %s154 = sphi 0, %s154
      %s156 = sphi 0, %s154
      %s157 = sphi 0, %s156
      %s171 = sphi 0, %s157
      %s175 = sphi 0, %s175
      %s177 = sphi 0, %s175
      %s178 = sphi 0, %s177
      %s192 = sphi 0, %s178
      %s196 = sphi 0, %s196
      %s198 = sphi 0, %s196
      %s199 = sphi 0, %s198
      %s213 = sphi 0, %s199
      %s217 = sphi 0, %s217
      %s219 = sphi 0, %s217
      %s220 = sphi 0, %s219
      %s234 = sphi 0, %s220
      %s238 = sphi 0, %s238
      %s240 = sphi 0, %s238
      %s241 = sphi 0, %s240
      %s255 = sphi 0, %s241
      %s261 = sphi 0, %s263
      %s264 = sphi 0, %s261
      %s265 = sphi 0, %s264
      %s281 = sphi 0, %s265
      %s287 = sphi 0, %s289
      %s290 = sphi 0, %s287
      %s291 = sphi 0, %s290
      %s307 = sphi 0, %s291
    $region4: #{tpu_custom_call.1} parent=1 // loop_header_branch
      %34 = sbr.rel (%p32) target = $region8
    $region5: #{tpu_custom_call.1} parent=1 // loop_body
      %s36 = ssub.s32 %s31, 1
      %s37 = ssub.s32 %s31, 2
      %s38 = sadd.s32 %s31, 1
      %s39 = ssub.s32 %s31, %s38
      %p40 = scmp.eq.s32.totalorder %s39, 0
      %s42 = sadd.s32 %s41, 1
      %s43 = scalar_select %p40, %s41, %s42
      %p46 = pneg %p40
      %p47 = scmp.eq.s32.totalorder %s31, 1
      %p48 = por %p46, %p47
      %p49 = scmp.ne.s32.totalorder %s41, %s44
      %p50 = scmp.eq.s32.totalorder %s31, 0
      %p51 = por %p49, %p50
      %p52 = scmp.ne.s32.totalorder %s41, %s44
      %p53 = scmp.eq.s32.totalorder %s36, 1
      %p54 = por %p52, %p53
      %p55 = scmp.ne.s32.totalorder %s44, %s45
      %p56 = scmp.eq.s32.totalorder %s36, 0
      %p57 = por %p55, %p56
      %p58 = scmp.ne.s32.totalorder %s44, %s45
      %p59 = scmp.eq.s32.totalorder %s37, 1
      %p60 = por %p58, %p59
      %p62 = scmp.ne.s32.totalorder %s45, %s61
      %p63 = scmp.eq.s32.totalorder %s37, 0
      %p64 = por %p62, %p63
      %s65 = ssub.s32 %s31, %s38
      %p66 = scmp.eq.s32.totalorder %s65, 0
      %s68 = sadd.s32 %s67, 1
      %s69 = scalar_select %p66, %s67, %s68
      %p72 = pneg %p66
      %p73 = scmp.eq.s32.totalorder %s31, 1
      %p74 = por %p72, %p73
      %p75 = scmp.ne.s32.totalorder %s67, %s70
      %p76 = scmp.eq.s32.totalorder %s31, 0
      %p77 = por %p75, %p76
      %p78 = scmp.ne.s32.totalorder %s67, %s70
      %p79 = scmp.eq.s32.totalorder %s36, 1
      %p80 = por %p78, %p79
      %p81 = scmp.ne.s32.totalorder %s70, %s71
      %p82 = scmp.eq.s32.totalorder %s36, 0
      %p83 = por %p81, %p82
      %p84 = scmp.ne.s32.totalorder %s70, %s71
      %p85 = scmp.eq.s32.totalorder %s37, 1
      %p86 = por %p84, %p85
      %p88 = scmp.ne.s32.totalorder %s71, %s87
      %p89 = scmp.eq.s32.totalorder %s37, 0
      %p90 = por %p88, %p89
      %s92 = sadd.s32 %s91, 1
      %p95 = scmp.eq.s32.totalorder %s31, 1
      %p96 = scmp.ne.s32.totalorder %s91, %s93
      %p97 = scmp.eq.s32.totalorder %s31, 0
      %p98 = por %p96, %p97
      %p99 = scmp.ne.s32.totalorder %s91, %s93
      %p100 = scmp.eq.s32.totalorder %s36, 1
      %p101 = por %p99, %p100
      %p102 = scmp.ne.s32.totalorder %s93, %s94
      %p103 = scmp.eq.s32.totalorder %s36, 0
      %p104 = por %p102, %p103
      %p105 = scmp.ne.s32.totalorder %s93, %s94
      %p106 = scmp.eq.s32.totalorder %s37, 1
      %p107 = por %p105, %p106
      %p109 = scmp.ne.s32.totalorder %s94, %s108
      %p110 = scmp.eq.s32.totalorder %s37, 0
      %p111 = por %p109, %p110
      %s113 = sadd.s32 %s112, 1
      %p116 = scmp.eq.s32.totalorder %s31, 1
      %p117 = scmp.ne.s32.totalorder %s112, %s114
      %p118 = scmp.eq.s32.totalorder %s31, 0
      %p119 = por %p117, %p118
      %p120 = scmp.ne.s32.totalorder %s112, %s114
      %p121 = scmp.eq.s32.totalorder %s36, 1
      %p122 = por %p120, %p121
      %p123 = scmp.ne.s32.totalorder %s114, %s115
      %p124 = scmp.eq.s32.totalorder %s36, 0
      %p125 = por %p123, %p124
      %p126 = scmp.ne.s32.totalorder %s114, %s115
      %p127 = scmp.eq.s32.totalorder %s37, 1
      %p128 = por %p126, %p127
      %p130 = scmp.ne.s32.totalorder %s115, %s129
      %p131 = scmp.eq.s32.totalorder %s37, 0
      %p132 = por %p130, %p131
      %s134 = sadd.s32 %s133, 1
      %p137 = scmp.eq.s32.totalorder %s31, 1
      %p138 = scmp.ne.s32.totalorder %s133, %s135
      %p139 = scmp.eq.s32.totalorder %s31, 0
      %p140 = por %p138, %p139
      %p141 = scmp.ne.s32.totalorder %s133, %s135
      %p142 = scmp.eq.s32.totalorder %s36, 1
      %p143 = por %p141, %p142
      %p144 = scmp.ne.s32.totalorder %s135, %s136
      %p145 = scmp.eq.s32.totalorder %s36, 0
      %p146 = por %p144, %p145
      %p147 = scmp.ne.s32.totalorder %s135, %s136
      %p148 = scmp.eq.s32.totalorder %s37, 1
      %p149 = por %p147, %p148
      %p151 = scmp.ne.s32.totalorder %s136, %s150
      %p152 = scmp.eq.s32.totalorder %s37, 0
      %p153 = por %p151, %p152
      %s155 = sadd.s32 %s154, 1
      %p158 = scmp.eq.s32.totalorder %s31, 1
      %p159 = scmp.ne.s32.totalorder %s154, %s156
      %p160 = scmp.eq.s32.totalorder %s31, 0
      %p161 = por %p159, %p160
      %p162 = scmp.ne.s32.totalorder %s154, %s156
      %p163 = scmp.eq.s32.totalorder %s36, 1
      %p164 = por %p162, %p163
      %p165 = scmp.ne.s32.totalorder %s156, %s157
      %p166 = scmp.eq.s32.totalorder %s36, 0
      %p167 = por %p165, %p166
      %p168 = scmp.ne.s32.totalorder %s156, %s157
      %p169 = scmp.eq.s32.totalorder %s37, 1
      %p170 = por %p168, %p169
      %p172 = scmp.ne.s32.totalorder %s157, %s171
      %p173 = scmp.eq.s32.totalorder %s37, 0
      %p174 = por %p172, %p173
      %s176 = sadd.s32 %s175, 1
      %p179 = scmp.eq.s32.totalorder %s31, 1
      %p180 = scmp.ne.s32.totalorder %s175, %s177
      %p181 = scmp.eq.s32.totalorder %s31, 0
      %p182 = por %p180, %p181
      %p183 = scmp.ne.s32.totalorder %s175, %s177
      %p184 = scmp.eq.s32.totalorder %s36, 1
      %p185 = por %p183, %p184
      %p186 = scmp.ne.s32.totalorder %s177, %s178
      %p187 = scmp.eq.s32.totalorder %s36, 0
      %p188 = por %p186, %p187
      %p189 = scmp.ne.s32.totalorder %s177, %s178
      %p190 = scmp.eq.s32.totalorder %s37, 1
      %p191 = por %p189, %p190
      %p193 = scmp.ne.s32.totalorder %s178, %s192
      %p194 = scmp.eq.s32.totalorder %s37, 0
      %p195 = por %p193, %p194
      %s197 = sadd.s32 %s196, 1
      %p200 = scmp.eq.s32.totalorder %s31, 1
      %p201 = scmp.ne.s32.totalorder %s196, %s198
      %p202 = scmp.eq.s32.totalorder %s31, 0
      %p203 = por %p201, %p202
      %p204 = scmp.ne.s32.totalorder %s196, %s198
      %p205 = scmp.eq.s32.totalorder %s36, 1
      %p206 = por %p204, %p205
      %p207 = scmp.ne.s32.totalorder %s198, %s199
      %p208 = scmp.eq.s32.totalorder %s36, 0
      %p209 = por %p207, %p208
      %p210 = scmp.ne.s32.totalorder %s198, %s199
      %p211 = scmp.eq.s32.totalorder %s37, 1
      %p212 = por %p210, %p211
      %p214 = scmp.ne.s32.totalorder %s199, %s213
      %p215 = scmp.eq.s32.totalorder %s37, 0
      %p216 = por %p214, %p215
      %s218 = sadd.s32 %s217, 1
      %p221 = scmp.eq.s32.totalorder %s31, 1
      %p222 = scmp.ne.s32.totalorder %s217, %s219
      %p223 = scmp.eq.s32.totalorder %s31, 0
      %p224 = por %p222, %p223
      %p225 = scmp.ne.s32.totalorder %s217, %s219
      %p226 = scmp.eq.s32.totalorder %s36, 1
      %p227 = por %p225, %p226
      %p228 = scmp.ne.s32.totalorder %s219, %s220
      %p229 = scmp.eq.s32.totalorder %s36, 0
      %p230 = por %p228, %p229
      %p231 = scmp.ne.s32.totalorder %s219, %s220
      %p232 = scmp.eq.s32.totalorder %s37, 1
      %p233 = por %p231, %p232
      %p235 = scmp.ne.s32.totalorder %s220, %s234
      %p236 = scmp.eq.s32.totalorder %s37, 0
      %p237 = por %p235, %p236
      %s239 = sadd.s32 %s238, 1
      %p242 = scmp.eq.s32.totalorder %s31, 1
      %p243 = scmp.ne.s32.totalorder %s238, %s240
      %p244 = scmp.eq.s32.totalorder %s31, 0
      %p245 = por %p243, %p244
      %p246 = scmp.ne.s32.totalorder %s238, %s240
      %p247 = scmp.eq.s32.totalorder %s36, 1
      %p248 = por %p246, %p247
      %p249 = scmp.ne.s32.totalorder %s240, %s241
      %p250 = scmp.eq.s32.totalorder %s36, 0
      %p251 = por %p249, %p250
      %p252 = scmp.ne.s32.totalorder %s240, %s241
      %p253 = scmp.eq.s32.totalorder %s37, 1
      %p254 = por %p252, %p253
      %p256 = scmp.ne.s32.totalorder %s241, %s255
      %p257 = scmp.eq.s32.totalorder %s37, 0
      %p258 = por %p256, %p257
      %s259 = ssub.s32 %s31, %s38
      %p260 = scmp.eq.s32.totalorder %s259, 0
      %s262 = sadd.s32 %s261, 1
      %s263 = scalar_select %p260, %s261, %s262
      %p266 = pneg %p260
      %p267 = scmp.eq.s32.totalorder %s31, 1
      %p268 = por %p266, %p267
      %p269 = scmp.ne.s32.totalorder %s261, %s264
      %p270 = scmp.eq.s32.totalorder %s31, 0
      %p271 = por %p269, %p270
      %p272 = scmp.ne.s32.totalorder %s261, %s264
      %p273 = scmp.eq.s32.totalorder %s36, 1
      %p274 = por %p272, %p273
      %p275 = scmp.ne.s32.totalorder %s264, %s265
      %p276 = scmp.eq.s32.totalorder %s36, 0
      %p277 = por %p275, %p276
      %p278 = scmp.ne.s32.totalorder %s264, %s265
      %p279 = scmp.eq.s32.totalorder %s37, 1
      %p280 = por %p278, %p279
      %p282 = scmp.ne.s32.totalorder %s265, %s281
      %p283 = scmp.eq.s32.totalorder %s37, 0
      %p284 = por %p282, %p283
      %s285 = ssub.s32 %s31, %s38
      %p286 = scmp.eq.s32.totalorder %s285, 0
      %s288 = sadd.s32 %s287, 1
      %s289 = scalar_select %p286, %s287, %s288
      %p292 = pneg %p286
      %p293 = scmp.eq.s32.totalorder %s31, 1
      %p294 = por %p292, %p293
      %p295 = scmp.ne.s32.totalorder %s287, %s290
      %p296 = scmp.eq.s32.totalorder %s31, 0
      %p297 = por %p295, %p296
      %p298 = scmp.ne.s32.totalorder %s287, %s290
      %p299 = scmp.eq.s32.totalorder %s36, 1
      %p300 = por %p298, %p299
      %p301 = scmp.ne.s32.totalorder %s290, %s291
      %p302 = scmp.eq.s32.totalorder %s36, 0
      %p303 = por %p301, %p302
      %p304 = scmp.ne.s32.totalorder %s290, %s291
      %p305 = scmp.eq.s32.totalorder %s37, 1
      %p306 = por %p304, %p305
      %p308 = scmp.ne.s32.totalorder %s291, %s307
      %p309 = scmp.eq.s32.totalorder %s37, 0
      %p310 = por %p308, %p309
      %p311 = scmp.le.s32.totalorder 1, %s31
      %p312 = scmp.lt.s32.totalorder %s31, 3
      %p313 = pnand %p311, %p312
      %p314 = pneg %p313
      // Predicated region
      $region9: #{tpu_custom_call.1} parent=5 // pred_check
        _
      $region10: #{tpu_custom_call.1} parent=5 // pred_check_branch
        %316 = sbr.rel (%p313) target = $region12
      $region11: #{tpu_custom_call.1} parent=5 // pred_region
        %s317 = ssub.s32 %s31, 1
        // Predicated region
        $region13: #{tpu_custom_call.1} parent=11 // pred_check
          %p318 = pneg %p104
        $region14: #{tpu_custom_call.1} parent=11 // pred_check_branch
          %320 = sbr.rel (%p318) target = $region16
        $region15: #{tpu_custom_call.1} parent=11 // pred_region
          %s322 = ssub.s32 256, 256
          %323 = vsyncadd [#allocation7], %s322
          %s324 = sshll.u32 [#allocation8], 4
          %s325 = int_to_ptr.vmem [resolvable:$true] %s324
          %330 = dma.hbm_to_vmem [thread:$0]  %s2, 256, %s325, [#allocation7], 64, 64, 4
        $region16: #{tpu_custom_call.1} parent=11 // pred_fallthru
          _
        // Predicated region
        $region17: #{tpu_custom_call.1} parent=11 // pred_check
          %p331 = pneg %p125
        $region18: #{tpu_custom_call.1} parent=11 // pred_check_branch
          %333 = sbr.rel (%p331) target = $region20
        $region19: #{tpu_custom_call.1} parent=11 // pred_region
          _
        $region20: #{tpu_custom_call.1} parent=11 // pred_fallthru
          _
        // Predicated region
        $region21: #{tpu_custom_call.1} parent=11 // pred_check
          %p334 = pneg %p146
        $region22: #{tpu_custom_call.1} parent=11 // pred_check_branch
          %336 = sbr.rel (%p334) target = $region24
        $region23: #{tpu_custom_call.1} parent=11 // pred_region
          %s338 = ssub.s32 256, 256
          %339 = vsyncadd [#allocation10], %s338
          %s340 = sshll.u32 [#allocation9], 4
          %s341 = int_to_ptr.vmem [resolvable:$true] %s340
          %346 = dma.hbm_to_vmem [thread:$0]  %s4, 256, %s341, [#allocation10], 64, 64, 4
        $region24: #{tpu_custom_call.1} parent=11 // pred_fallthru
          _
        // Predicated region
        $region25: #{tpu_custom_call.1} parent=11 // pred_check
          %p347 = pneg %p167
        $region26: #{tpu_custom_call.1} parent=11 // pred_check_branch
          %349 = sbr.rel (%p347) target = $region28
        $region27: #{tpu_custom_call.1} parent=11 // pred_region
          _
        $region28: #{tpu_custom_call.1} parent=11 // pred_fallthru
          _
        // Predicated region
        $region29: #{tpu_custom_call.1} parent=11 // pred_check
          %p350 = pneg %p188
        $region30: #{tpu_custom_call.1} parent=11 // pred_check_branch
          %352 = sbr.rel (%p350) target = $region32
        $region31: #{tpu_custom_call.1} parent=11 // pred_region
          _
        $region32: #{tpu_custom_call.1} parent=11 // pred_fallthru
          _
        // Predicated region
        $region33: #{tpu_custom_call.1} parent=11 // pred_check
          %p353 = pneg %p209
        $region34: #{tpu_custom_call.1} parent=11 // pred_check_branch
          %355 = sbr.rel (%p353) target = $region36
        $region35: #{tpu_custom_call.1} parent=11 // pred_region
          _
        $region36: #{tpu_custom_call.1} parent=11 // pred_fallthru
          _
        // Predicated region
        $region37: #{tpu_custom_call.1} parent=11 // pred_check
          %p356 = pneg %p230
        $region38: #{tpu_custom_call.1} parent=11 // pred_check_branch
          %358 = sbr.rel (%p356) target = $region40
        $region39: #{tpu_custom_call.1} parent=11 // pred_region
          %s360 = ssub.s32 512, 512
          %361 = vsyncadd [#allocation10], %s360
          %s362 = sshll.u32 [#allocation11], 4
          %s363 = int_to_ptr.vmem [resolvable:$true] %s362
          %368 = dma.hbm_to_vmem [thread:$0]  %s8, 512, %s363, [#allocation10], 128, 128, 8
        $region40: #{tpu_custom_call.1} parent=11 // pred_fallthru
          _
        // Predicated region
        $region41: #{tpu_custom_call.1} parent=11 // pred_check
          %p369 = pneg %p251
        $region42: #{tpu_custom_call.1} parent=11 // pred_check_branch
          %371 = sbr.rel (%p369) target = $region44
        $region43: #{tpu_custom_call.1} parent=11 // pred_region
          _
        $region44: #{tpu_custom_call.1} parent=11 // pred_fallthru
          _
      $region12: #{tpu_custom_call.1} parent=5 // pred_fallthru
        _
      %p372 = scmp.lt.s32.totalorder %s31, 2
      // Predicated region
      $region45: #{tpu_custom_call.1} parent=5 // pred_check
        %p373 = pneg %p372
      $region46: #{tpu_custom_call.1} parent=5 // pred_check_branch
        %375 = sbr.rel (%p373) target = $region48
      $region47: #{tpu_custom_call.1} parent=5 // pred_region
        // Predicated region
        $region49: #{tpu_custom_call.1} parent=47 // pred_check
          %p376 = pneg %p51
        $region50: #{tpu_custom_call.1} parent=47 // pred_check_branch
          %378 = sbr.rel (%p376) target = $region52
        $region51: #{tpu_custom_call.1} parent=47 // pred_region
          %s379 = sand.u32 %s41, 1
          %s380 = scalar_lea.sflag [#allocation4], %s379
          %s381 = sand.u32 %s41, 1
          %s382 = smul.addr %s381, 8
          %s383 = scalar_lea.vmem [#allocation3], %s382
          %s385 = ssub.s32 128, 128
          %386 = vsyncadd %s380, %s385
          %s387 = smul.addr %s31, 128
          %s388 = scalar_lea.hbm %s0, %s387
          %s390 = sshll.u32 %s383, 4
          %s391 = int_to_ptr.vmem [resolvable:$true] %s390
          %393 = dma.hbm_to_vmem [thread:$0]  %s388, 128, %s391, %s380
        $region52: #{tpu_custom_call.1} parent=47 // pred_fallthru
          _
        // Predicated region
        $region53: #{tpu_custom_call.1} parent=47 // pred_check
          %p394 = pneg %p77
        $region54: #{tpu_custom_call.1} parent=47 // pred_check_branch
          %396 = sbr.rel (%p394) target = $region56
        $region55: #{tpu_custom_call.1} parent=47 // pred_region
          %s397 = sand.u32 %s31, 1
          %s398 = scalar_lea.sflag [#allocation7], %s397
          %s399 = sand.u32 %s67, 1
          %s400 = smul.addr %s399, 8
          %s401 = scalar_lea.vmem [#allocation6], %s400
          %s403 = ssub.s32 128, 128
          %404 = vsyncadd %s398, %s403
          %s405 = smul.addr %s31, 128
          %s406 = scalar_lea.hbm %s1, %s405
          %s408 = sshll.u32 %s401, 4
          %s409 = int_to_ptr.vmem [resolvable:$true] %s408
          %411 = dma.hbm_to_vmem [thread:$0]  %s406, 128, %s409, %s398
        $region56: #{tpu_custom_call.1} parent=47 // pred_fallthru
          _
      $region48: #{tpu_custom_call.1} parent=5 // pred_fallthru
        _
      %p412 = scmp.le.s32.totalorder 1, %s31
      %p413 = scmp.lt.s32.totalorder %s31, 3
      %p414 = pnand %p412, %p413
      %p415 = pneg %p414
      // Predicated region
      $region57: #{tpu_custom_call.1} parent=5 // pred_check
        _
      $region58: #{tpu_custom_call.1} parent=5 // pred_check_branch
        %417 = sbr.rel (%p414) target = $region60
      $region59: #{tpu_custom_call.1} parent=5 // pred_region
        %s418 = ssub.s32 %s31, 1
        %s419 = sand.u32 %s44, 1
        %s420 = scalar_lea.sflag [#allocation4], %s419
        %s421 = sand.u32 %s44, 1
        %s422 = smul.addr %s421, 8
        %s423 = scalar_lea.vmem [#allocation3], %s422
        // Predicated region
        $region61: #{tpu_custom_call.1} parent=59 // pred_check
          %p424 = pneg %p57
        $region62: #{tpu_custom_call.1} parent=59 // pred_check_branch
          %426 = sbr.rel (%p424) target = $region64
        $region63: #{tpu_custom_call.1} parent=59 // pred_region
          %427 = dma.done %s420, 128
        $region64: #{tpu_custom_call.1} parent=59 // pred_fallthru
          _
        %s428 = sand.u32 %s36, 1
        %s429 = scalar_lea.sflag [#allocation7], %s428
        %s430 = sand.u32 %s70, 1
        %s431 = smul.addr %s430, 8
        %s432 = scalar_lea.vmem [#allocation6], %s431
        // Predicated region
        $region65: #{tpu_custom_call.1} parent=59 // pred_check
          %p433 = pneg %p83
        $region66: #{tpu_custom_call.1} parent=59 // pred_check_branch
          %435 = sbr.rel (%p433) target = $region68
        $region67: #{tpu_custom_call.1} parent=59 // pred_region
          %436 = dma.done %s429, 128
        $region68: #{tpu_custom_call.1} parent=59 // pred_fallthru
          _
        // Predicated region
        $region69: #{tpu_custom_call.1} parent=59 // pred_check
          %p437 = pneg %p104
        $region70: #{tpu_custom_call.1} parent=59 // pred_check_branch
          %439 = sbr.rel (%p437) target = $region72
        $region71: #{tpu_custom_call.1} parent=59 // pred_region
          %440 = dma.done [#allocation7], 256
        $region72: #{tpu_custom_call.1} parent=59 // pred_fallthru
          _
        // Predicated region
        $region73: #{tpu_custom_call.1} parent=59 // pred_check
          %p441 = pneg %p146
        $region74: #{tpu_custom_call.1} parent=59 // pred_check_branch
          %443 = sbr.rel (%p441) target = $region76
        $region75: #{tpu_custom_call.1} parent=59 // pred_region
          %444 = dma.done [#allocation10], 256
        $region76: #{tpu_custom_call.1} parent=59 // pred_fallthru
          _
        // Predicated region
        $region77: #{tpu_custom_call.1} parent=59 // pred_check
          %p445 = pneg %p230
        $region78: #{tpu_custom_call.1} parent=59 // pred_check_branch
          %447 = sbr.rel (%p445) target = $region80
        $region79: #{tpu_custom_call.1} parent=59 // pred_region
          %448 = dma.done [#allocation10], 512
        $region80: #{tpu_custom_call.1} parent=59 // pred_fallthru
          _
        %s449 = sand.u32 %s44, 1
        %s450 = scalar_lea.sflag [#allocation4], %s449
        %s451 = sand.u32 %s44, 1
        %s452 = smul.addr %s451, 8
        %s453 = scalar_lea.vmem [#allocation3], %s452
        %p454 = pneg %p57
        %p455 = pneg %p54
        %s456 = sand.u32 %s36, 1
        %s457 = scalar_lea.sflag [#allocation7], %s456
        %s458 = sand.u32 %s70, 1
        %s459 = smul.addr %s458, 8
        %s460 = scalar_lea.vmem [#allocation6], %s459
        %p461 = pneg %p83
        %p462 = pneg %p80
        %p463 = pneg %p104
        %p464 = pneg %p101
        %p465 = pneg %p125
        %p466 = pneg %p122
        %p467 = pneg %p146
        %p468 = pneg %p143
        %p469 = pneg %p167
        %p470 = pneg %p164
        %p471 = pneg %p188
        %p472 = pneg %p185
        %p473 = pneg %p209
        %p474 = pneg %p206
        %p475 = pneg %p230
        %p476 = pneg %p227
        %p477 = pneg %p251
        %p478 = pneg %p248
        %p479 = pneg %p277
        %p480 = pneg %p274
        %s481 = sand.u32 %s264, 1
        %s482 = scalar_lea.sflag [#allocation5], %s481
        %s483 = sand.u32 %s264, 1
        %s484 = smul.addr %s483, 8
        %s485 = scalar_lea.vmem [#allocation12], %s484
        %p486 = pneg %p303
        %p487 = pneg %p300
        %s488 = sand.u32 %s290, 1
        %s489 = scalar_lea.sflag [#allocation14], %s488
        %s490 = sand.u32 %s290, 1
        %s491 = smul.addr %s490, 16
        %s492 = scalar_lea.vmem [#allocation13], %s491
        %v494 = vld [vmem:[%s423] sm:$0xff]
        %v495 = vld [vmem:[%s432] sm:$0xff]
        %v496 = vadd.f32 %v494, %v495
        %v497 = vpack.c.bf16 %v496, %v496
        %v498 = vpack.c.bf16 %v494, %v494
        %v499 = vld [vmem:[#allocation8] sm:$0xf]
        %v500 = vld [vmem:[#allocation8 + $0x4] sm:$0xf]
        %v501 = vld [vmem:[#allocation8 + $0x8] sm:$0xf]
        %v502 = vld [vmem:[#allocation8 + $0xc] sm:$0xf]
        %v503 = vld [vmem:[%s3] sm:$0x1]
        %v505 = vlaneseq
        %v506 = vshrl.u32 %v505, 7
        %v507 = vsub.s32 0, %v506
        %v508 = vrot.slane %v503, %v507
        %v514 = vunpack.c.l.b16 %v499
        %v515 = vunpack.c.l.b16 %v500
        %v516 = vunpack.c.l.b16 %v501
        %v517 = vunpack.c.l.b16 %v502
        %v518 = vpack.c.b16 %v515, %v514
        %v519 = vpack.c.b16 %v517, %v516
        %vm522 = vcmask 261120
        %v524 = vsel %vm522, %v497, 0
        %526 = vmatprep.subr.bf16.mxu0 0
        %527 = vmatpush1.bf16.msra.mxu0 %v518
        %528 = vmatprep.subr.bf16.mxu0 0
        %529 = vmatpush1.bf16.msra.mxu0 %v519
        %530 = vmatprep.subr.bf16.mxu0 0
        %531 = vmatpush1.bf16.msra.mxu0 0
        %532 = vmatprep.subr.bf16.mxu0 0
        %533 = vmatpush1.bf16.msra.mxu0 0
        %534 = vmatprep.subr.bf16.mxu0 0
        %535 = vmatpush1.bf16.msra.mxu0 0
        %536 = vmatprep.subr.bf16.mxu0 0
        %537 = vmatpush1.bf16.msra.mxu0 0
        %538 = vmatprep.subr.bf16.mxu0 0
        %539 = vmatpush1.bf16.msra.mxu0 0
        %540 = vmatprep.subr.bf16.mxu0 0
        %541 = vmatpush1.bf16.msra.mxu0 0
        %542 = vmatprep.subr.bf16.mxu0 0
        %543 = vmatpush1.bf16.msra.mxu0 0
        %544 = vmatprep.subr.bf16.mxu0 0
        %545 = vmatpush1.bf16.msra.mxu0 0
        %546 = vmatprep.subr.bf16.mxu0 0
        %547 = vmatpush1.bf16.msra.mxu0 0
        %548 = vmatprep.subr.bf16.mxu0 0
        %549 = vmatpush1.bf16.msra.mxu0 0
        %550 = vmatprep.subr.bf16.mxu0 0
        %551 = vmatpush1.bf16.msra.mxu0 0
        %552 = vmatprep.subr.bf16.mxu0 0
        %553 = vmatpush1.bf16.msra.mxu0 0
        %554 = vmatprep.subr.bf16.mxu0 0
        %555 = vmatpush1.bf16.msra.mxu0 0
        %556 = vmatprep.subr.bf16.mxu0 0
        %557 = vmatpush1.bf16.msra.mxu0 0
        %558 = vmatprep.mubr.bf16.mxu0 0
        %559 = vmatmul.mubr.bf16.gmra.mrb[0].mxu0 %v524
        %v560 = vpop.f32.mrb[0].mxu0
        %v561 = vadd.f32 %v508, %v560
        %v562 = vpop.f32.mrb[0].mxu0
        %v563 = vpop.f32.mrb[0].mxu0
        %v564 = vpop.f32.mrb[0].mxu0
        %565 = vdwg.mxu0
        %566 = vrot.lane.b32.xlu0 %v518, 64
        %v567 = vpop.permute.xlu0 %566
        %568 = vrot.lane.b32.xlu0 %v519, 64
        %v569 = vpop.permute.xlu0 %568
        %572 = vrot.lane.b32.xlu0 %v508, 64
        %v573 = vpop.permute.xlu0 %572
        %v576 = vsel %vm522, %v498, 0
        %578 = vmatprep.subr.bf16.mxu0 0
        %579 = vmatpush1.bf16.msra.mxu0 %v567
        %580 = vmatprep.subr.bf16.mxu0 0
        %581 = vmatpush1.bf16.msra.mxu0 %v569
        %582 = vmatprep.subr.bf16.mxu0 0
        %583 = vmatpush1.bf16.msra.mxu0 0
        %584 = vmatprep.subr.bf16.mxu0 0
        %585 = vmatpush1.bf16.msra.mxu0 0
        %586 = vmatprep.subr.bf16.mxu0 0
        %587 = vmatpush1.bf16.msra.mxu0 0
        %588 = vmatprep.subr.bf16.mxu0 0
        %589 = vmatpush1.bf16.msra.mxu0 0
        %590 = vmatprep.subr.bf16.mxu0 0
        %591 = vmatpush1.bf16.msra.mxu0 0
        %592 = vmatprep.subr.bf16.mxu0 0
        %593 = vmatpush1.bf16.msra.mxu0 0
        %594 = vmatprep.subr.bf16.mxu0 0
        %595 = vmatpush1.bf16.msra.mxu0 0
        %596 = vmatprep.subr.bf16.mxu0 0
        %597 = vmatpush1.bf16.msra.mxu0 0
        %598 = vmatprep.subr.bf16.mxu0 0
        %599 = vmatpush1.bf16.msra.mxu0 0
        %600 = vmatprep.subr.bf16.mxu0 0
        %601 = vmatpush1.bf16.msra.mxu0 0
        %602 = vmatprep.subr.bf16.mxu0 0
        %603 = vmatpush1.bf16.msra.mxu0 0
        %604 = vmatprep.subr.bf16.mxu0 0
        %605 = vmatpush1.bf16.msra.mxu0 0
        %606 = vmatprep.subr.bf16.mxu0 0
        %607 = vmatpush1.bf16.msra.mxu0 0
        %608 = vmatprep.subr.bf16.mxu0 0
        %609 = vmatpush1.bf16.msra.mxu0 0
        %610 = vmatprep.mubr.bf16.mxu0 0
        %611 = vmatmul.mubr.bf16.gmra.mrb[0].mxu0 %v576
        %v612 = vpop.f32.mrb[0].mxu0
        %v613 = vadd.f32 %v573, %v612
        %v614 = vpop.f32.mrb[0].mxu0
        %v615 = vpop.f32.mrb[0].mxu0
        %v616 = vpop.f32.mrb[0].mxu0
        %617 = vdwg.mxu0
        %v618 = vmul.f32 %v561, 0.35355338
        %v619 = vpack.c.bf16 %v618, %v618
        %v620 = vpack.c.bf16 %v561, %v561
        %v621 = vpack.c.bf16 %v613, %v613
        %623 = vrot.lane.b32.xlu0 %v620, 96
        %v624 = vpop.permute.xlu0 %623
        %vm625 = vcmask 64512
        %v627 = vsel %vm625, %v619, 0
        %v630 = vsel %vm625, %v624, 0
        %632 = vmatprep.subr.bf16.mxu0 0
        %633 = vmatpush1.bf16.xpose.msra.mxu0 %v630
        %634 = vmatprep.subr.bf16.mxu0 0
        %635 = vmatpush1.bf16.xpose.msra.mxu0 0
        %636 = vmatprep.subr.bf16.mxu0 0
        %637 = vmatpush1.bf16.xpose.msra.mxu0 0
        %638 = vmatprep.subr.bf16.mxu0 0
        %639 = vmatpush1.bf16.xpose.msra.mxu0 0
        %640 = vmatprep.subr.bf16.mxu0 0
        %641 = vmatpush1.bf16.xpose.msra.mxu0 0
        %642 = vmatprep.subr.bf16.mxu0 0
        %643 = vmatpush1.bf16.xpose.msra.mxu0 0
        %644 = vmatprep.subr.bf16.mxu0 0
        %645 = vmatpush1.bf16.xpose.msra.mxu0 0
        %646 = vmatprep.subr.bf16.mxu0 0
        %647 = vmatpush1.bf16.xpose.msra.mxu0 0
        %648 = vmatprep.subr.bf16.mxu0 0
        %649 = vmatpush1.bf16.xpose.msra.mxu0 0
        %650 = vmatprep.subr.bf16.mxu0 0
        %651 = vmatpush1.bf16.xpose.msra.mxu0 0
        %652 = vmatprep.subr.bf16.mxu0 0
        %653 = vmatpush1.bf16.xpose.msra.mxu0 0
        %654 = vmatprep.subr.bf16.mxu0 0
        %655 = vmatpush1.bf16.xpose.msra.mxu0 0
        %656 = vmatprep.subr.bf16.mxu0 0
        %657 = vmatpush1.bf16.xpose.msra.mxu0 0
        %658 = vmatprep.subr.bf16.mxu0 0
        %659 = vmatpush1.bf16.xpose.msra.mxu0 0
        %660 = vmatprep.subr.bf16.mxu0 0
        %661 = vmatpush1.bf16.xpose.msra.mxu0 0
        %662 = vmatprep.subr.bf16.mxu0 0
        %663 = vmatpush1.bf16.xpose.msra.mxu0 0
        %664 = vmatprep.mubr.bf16.mxu0 0
        %665 = vmatmul.mubr.bf16.gmra.mrb[0].mxu0 %v627
        %v666 = vpop.f32.mrb[0].mxu0
        %v667 = vadd.f32 0.0, %v666
        %v668 = vpop.f32.mrb[0].mxu0
        %v669 = vpop.f32.mrb[0].mxu0
        %v670 = vpop.f32.mrb[0].mxu0
        %671 = vdwg.mxu0
        %v672 = vsel %vm625, %v667, -inf
        %673 = vmax.xlane.f32.xlu0 %v672
        %v674 = vpop.xlane.xlu0 %673
        %v675 = vsub.f32 %v667, %v674
        %v676 = vmul.f32 %v675, 1.442695
        %v677 = vpow.pop %v676
        %v678 = vsel %vm625, %v677, 0.0
        %679 = vadd.xlane.f32.xlu0 %v678
        %v680 = vpop.xlane.xlu0 %679
        %v681 = vrcp.pop %v680
        %v682 = vmul.f32 %v677, %v681
        %v683 = vpack.c.bf16 %v682, %v682
        %v685 = vsel %vm625, %v683, 0
        %vm687 = vcmask 1043456
        %v689 = vsel %vm687, %v621, 0
        %691 = vmatprep.subr.bf16.mxu0 0
        %692 = vmatpush1.bf16.msra.mxu0 %v689
        %693 = vmatprep.subr.bf16.mxu0 0
        %694 = vmatpush1.bf16.msra.mxu0 0
        %695 = vmatprep.subr.bf16.mxu0 0
        %696 = vmatpush1.bf16.msra.mxu0 0
        %697 = vmatprep.subr.bf16.mxu0 0
        %698 = vmatpush1.bf16.msra.mxu0 0
        %699 = vmatprep.subr.bf16.mxu0 0
        %700 = vmatpush1.bf16.msra.mxu0 0
        %701 = vmatprep.subr.bf16.mxu0 0
        %702 = vmatpush1.bf16.msra.mxu0 0
        %703 = vmatprep.subr.bf16.mxu0 0
        %704 = vmatpush1.bf16.msra.mxu0 0
        %705 = vmatprep.subr.bf16.mxu0 0
        %706 = vmatpush1.bf16.msra.mxu0 0
        %707 = vmatprep.subr.bf16.mxu0 0
        %708 = vmatpush1.bf16.msra.mxu0 0
        %709 = vmatprep.subr.bf16.mxu0 0
        %710 = vmatpush1.bf16.msra.mxu0 0
        %711 = vmatprep.subr.bf16.mxu0 0
        %712 = vmatpush1.bf16.msra.mxu0 0
        %713 = vmatprep.subr.bf16.mxu0 0
        %714 = vmatpush1.bf16.msra.mxu0 0
        %715 = vmatprep.subr.bf16.mxu0 0
        %716 = vmatpush1.bf16.msra.mxu0 0
        %717 = vmatprep.subr.bf16.mxu0 0
        %718 = vmatpush1.bf16.msra.mxu0 0
        %719 = vmatprep.subr.bf16.mxu0 0
        %720 = vmatpush1.bf16.msra.mxu0 0
        %721 = vmatprep.subr.bf16.mxu0 0
        %722 = vmatpush1.bf16.msra.mxu0 0
        %723 = vmatprep.mubr.bf16.mxu0 0
        %724 = vmatmul.mubr.bf16.gmra.mrb[0].mxu0 %v685
        %v725 = vpop.f32.mrb[0].mxu0
        %v726 = vadd.f32 0.0, %v725
        %v727 = vpop.f32.mrb[0].mxu0
        %v728 = vpop.f32.mrb[0].mxu0
        %v729 = vpop.f32.mrb[0].mxu0
        %730 = vdwg.mxu0
        %731 = vst.msk [vmem:[#allocation2] sm:$0xff] %vm625, %v726
        %733 = vrot.lane.b32.xlu0 %v619, 120
        %v734 = vpop.permute.xlu0 %733
        %735 = vrot.lane.b32.xlu0 %v620, 88
        %v736 = vpop.permute.xlu0 %735
        %v738 = vsel %vm625, %v734, 0
        %v741 = vsel %vm625, %v736, 0
        %743 = vmatprep.subr.bf16.mxu0 0
        %744 = vmatpush1.bf16.xpose.msra.mxu0 %v741
        %745 = vmatprep.subr.bf16.mxu0 0
        %746 = vmatpush1.bf16.xpose.msra.mxu0 0
        %747 = vmatprep.subr.bf16.mxu0 0
        %748 = vmatpush1.bf16.xpose.msra.mxu0 0
        %749 = vmatprep.subr.bf16.mxu0 0
        %750 = vmatpush1.bf16.xpose.msra.mxu0 0
        %751 = vmatprep.subr.bf16.mxu0 0
        %752 = vmatpush1.bf16.xpose.msra.mxu0 0
        %753 = vmatprep.subr.bf16.mxu0 0
        %754 = vmatpush1.bf16.xpose.msra.mxu0 0
        %755 = vmatprep.subr.bf16.mxu0 0
        %756 = vmatpush1.bf16.xpose.msra.mxu0 0
        %757 = vmatprep.subr.bf16.mxu0 0
        %758 = vmatpush1.bf16.xpose.msra.mxu0 0
        %759 = vmatprep.subr.bf16.mxu0 0
        %760 = vmatpush1.bf16.xpose.msra.mxu0 0
        %761 = vmatprep.subr.bf16.mxu0 0
        %762 = vmatpush1.bf16.xpose.msra.mxu0 0
        %763 = vmatprep.subr.bf16.mxu0 0
        %764 = vmatpush1.bf16.xpose.msra.mxu0 0
        %765 = vmatprep.subr.bf16.mxu0 0
        %766 = vmatpush1.bf16.xpose.msra.mxu0 0
        %767 = vmatprep.subr.bf16.mxu0 0
        %768 = vmatpush1.bf16.xpose.msra.mxu0 0
        %769 = vmatprep.subr.bf16.mxu0 0
        %770 = vmatpush1.bf16.xpose.msra.mxu0 0
        %771 = vmatprep.subr.bf16.mxu0 0
        %772 = vmatpush1.bf16.xpose.msra.mxu0 0
        %773 = vmatprep.subr.bf16.mxu0 0
        %774 = vmatpush1.bf16.xpose.msra.mxu0 0
        %775 = vmatprep.mubr.bf16.mxu0 0
        %776 = vmatmul.mubr.bf16.gmra.mrb[0].mxu0 %v738
        %v777 = vpop.f32.mrb[0].mxu0
        %v778 = vadd.f32 0.0, %v777
        %v779 = vpop.f32.mrb[0].mxu0
        %v780 = vpop.f32.mrb[0].mxu0
        %v781 = vpop.f32.mrb[0].mxu0
        %782 = vdwg.mxu0
        %v783 = vsel %vm625, %v778, -inf
        %784 = vmax.xlane.f32.xlu0 %v783
        %v785 = vpop.xlane.xlu0 %784
        %v786 = vsub.f32 %v778, %v785
        %v787 = vmul.f32 %v786, 1.442695
        %v788 = vpow.pop %v787
        %v789 = vsel %vm625, %v788, 0.0
        %790 = vadd.xlane.f32.xlu0 %v789
        %v791 = vpop.xlane.xlu0 %790
        %v792 = vrcp.pop %v791
        %v793 = vmul.f32 %v788, %v792
        %v794 = vpack.c.bf16 %v793, %v793
        %796 = vrot.lane.b32.xlu0 %v621, 120
        %v797 = vpop.permute.xlu0 %796
        %v799 = vsel %vm625, %v794, 0
        %v802 = vsel %vm687, %v797, 0
        %804 = vmatprep.subr.bf16.mxu0 0
        %805 = vmatpush1.bf16.msra.mxu0 %v802
        %806 = vmatprep.subr.bf16.mxu0 0
        %807 = vmatpush1.bf16.msra.mxu0 0
        %808 = vmatprep.subr.bf16.mxu0 0
        %809 = vmatpush1.bf16.msra.mxu0 0
        %810 = vmatprep.subr.bf16.mxu0 0
        %811 = vmatpush1.bf16.msra.mxu0 0
        %812 = vmatprep.subr.bf16.mxu0 0
        %813 = vmatpush1.bf16.msra.mxu0 0
        %814 = vmatprep.subr.bf16.mxu0 0
        %815 = vmatpush1.bf16.msra.mxu0 0
        %816 = vmatprep.subr.bf16.mxu0 0
        %817 = vmatpush1.bf16.msra.mxu0 0
        %818 = vmatprep.subr.bf16.mxu0 0
        %819 = vmatpush1.bf16.msra.mxu0 0
        %820 = vmatprep.subr.bf16.mxu0 0
        %821 = vmatpush1.bf16.msra.mxu0 0
        %822 = vmatprep.subr.bf16.mxu0 0
        %823 = vmatpush1.bf16.msra.mxu0 0
        %824 = vmatprep.subr.bf16.mxu0 0
        %825 = vmatpush1.bf16.msra.mxu0 0
        %826 = vmatprep.subr.bf16.mxu0 0
        %827 = vmatpush1.bf16.msra.mxu0 0
        %828 = vmatprep.subr.bf16.mxu0 0
        %829 = vmatpush1.bf16.msra.mxu0 0
        %830 = vmatprep.subr.bf16.mxu0 0
        %831 = vmatpush1.bf16.msra.mxu0 0
        %832 = vmatprep.subr.bf16.mxu0 0
        %833 = vmatpush1.bf16.msra.mxu0 0
        %834 = vmatprep.subr.bf16.mxu0 0
        %835 = vmatpush1.bf16.msra.mxu0 0
        %836 = vmatprep.mubr.bf16.mxu0 0
        %837 = vmatmul.mubr.bf16.gmra.mrb[0].mxu0 %v799
        %v838 = vpop.f32.mrb[0].mxu0
        %v839 = vadd.f32 0.0, %v838
        %v840 = vpop.f32.mrb[0].mxu0
        %v841 = vpop.f32.mrb[0].mxu0
        %v842 = vpop.f32.mrb[0].mxu0
        %843 = vdwg.mxu0
        %845 = vrot.lane.b32.xlu0 %v839, 8
        %v846 = vpop.permute.xlu0 %845
        %vm848 = vcmask 130112
        %849 = vst.msk [vmem:[#allocation2] sm:$0xff] %vm848, %v846
        %850 = vrot.lane.b32.xlu0 %v619, 112
        %v851 = vpop.permute.xlu0 %850
        %852 = vrot.lane.b32.xlu0 %v620, 80
        %v853 = vpop.permute.xlu0 %852
        %v855 = vsel %vm625, %v851, 0
        %v858 = vsel %vm625, %v853, 0
        %860 = vmatprep.subr.bf16.mxu0 0
        %861 = vmatpush1.bf16.xpose.msra.mxu0 %v858
        %862 = vmatprep.subr.bf16.mxu0 0
        %863 = vmatpush1.bf16.xpose.msra.mxu0 0
        %864 = vmatprep.subr.bf16.mxu0 0
        %865 = vmatpush1.bf16.xpose.msra.mxu0 0
        %866 = vmatprep.subr.bf16.mxu0 0
        %867 = vmatpush1.bf16.xpose.msra.mxu0 0
        %868 = vmatprep.subr.bf16.mxu0 0
        %869 = vmatpush1.bf16.xpose.msra.mxu0 0
        %870 = vmatprep.subr.bf16.mxu0 0
        %871 = vmatpush1.bf16.xpose.msra.mxu0 0
        %872 = vmatprep.subr.bf16.mxu0 0
        %873 = vmatpush1.bf16.xpose.msra.mxu0 0
        %874 = vmatprep.subr.bf16.mxu0 0
        %875 = vmatpush1.bf16.xpose.msra.mxu0 0
        %876 = vmatprep.subr.bf16.mxu0 0
        %877 = vmatpush1.bf16.xpose.msra.mxu0 0
        %878 = vmatprep.subr.bf16.mxu0 0
        %879 = vmatpush1.bf16.xpose.msra.mxu0 0
        %880 = vmatprep.subr.bf16.mxu0 0
        %881 = vmatpush1.bf16.xpose.msra.mxu0 0
        %882 = vmatprep.subr.bf16.mxu0 0
        %883 = vmatpush1.bf16.xpose.msra.mxu0 0
        %884 = vmatprep.subr.bf16.mxu0 0
        %885 = vmatpush1.bf16.xpose.msra.mxu0 0
        %886 = vmatprep.subr.bf16.mxu0 0
        %887 = vmatpush1.bf16.xpose.msra.mxu0 0
        %888 = vmatprep.subr.bf16.mxu0 0
        %889 = vmatpush1.bf16.xpose.msra.mxu0 0
        %890 = vmatprep.subr.bf16.mxu0 0
        %891 = vmatpush1.bf16.xpose.msra.mxu0 0
        %892 = vmatprep.mubr.bf16.mxu0 0
        %893 = vmatmul.mubr.bf16.gmra.mrb[0].mxu0 %v855
        %v894 = vpop.f32.mrb[0].mxu0
        %v895 = vadd.f32 0.0, %v894
        %v896 = vpop.f32.mrb[0].mxu0
        %v897 = vpop.f32.mrb[0].mxu0
        %v898 = vpop.f32.mrb[0].mxu0
        %899 = vdwg.mxu0
        %v900 = vsel %vm625, %v895, -inf
        %901 = vmax.xlane.f32.xlu0 %v900
        %v902 = vpop.xlane.xlu0 %901
        %v903 = vsub.f32 %v895, %v902
        %v904 = vmul.f32 %v903, 1.442695
        %v905 = vpow.pop %v904
        %v906 = vsel %vm625, %v905, 0.0
        %907 = vadd.xlane.f32.xlu0 %v906
        %v908 = vpop.xlane.xlu0 %907
        %v909 = vrcp.pop %v908
        %v910 = vmul.f32 %v905, %v909
        %v911 = vpack.c.bf16 %v910, %v910
        %912 = vrot.lane.b32.xlu0 %v621, 112
        %v913 = vpop.permute.xlu0 %912
        %v915 = vsel %vm625, %v911, 0
        %v918 = vsel %vm687, %v913, 0
        %920 = vmatprep.subr.bf16.mxu0 0
        %921 = vmatpush1.bf16.msra.mxu0 %v918
        %922 = vmatprep.subr.bf16.mxu0 0
        %923 = vmatpush1.bf16.msra.mxu0 0
        %924 = vmatprep.subr.bf16.mxu0 0
        %925 = vmatpush1.bf16.msra.mxu0 0
        %926 = vmatprep.subr.bf16.mxu0 0
        %927 = vmatpush1.bf16.msra.mxu0 0
        %928 = vmatprep.subr.bf16.mxu0 0
        %929 = vmatpush1.bf16.msra.mxu0 0
        %930 = vmatprep.subr.bf16.mxu0 0
        %931 = vmatpush1.bf16.msra.mxu0 0
        %932 = vmatprep.subr.bf16.mxu0 0
        %933 = vmatpush1.bf16.msra.mxu0 0
        %934 = vmatprep.subr.bf16.mxu0 0
        %935 = vmatpush1.bf16.msra.mxu0 0
        %936 = vmatprep.subr.bf16.mxu0 0
        %937 = vmatpush1.bf16.msra.mxu0 0
        %938 = vmatprep.subr.bf16.mxu0 0
        %939 = vmatpush1.bf16.msra.mxu0 0
        %940 = vmatprep.subr.bf16.mxu0 0
        %941 = vmatpush1.bf16.msra.mxu0 0
        %942 = vmatprep.subr.bf16.mxu0 0
        %943 = vmatpush1.bf16.msra.mxu0 0
        %944 = vmatprep.subr.bf16.mxu0 0
        %945 = vmatpush1.bf16.msra.mxu0 0
        %946 = vmatprep.subr.bf16.mxu0 0
        %947 = vmatpush1.bf16.msra.mxu0 0
        %948 = vmatprep.subr.bf16.mxu0 0
        %949 = vmatpush1.bf16.msra.mxu0 0
        %950 = vmatprep.subr.bf16.mxu0 0
        %951 = vmatpush1.bf16.msra.mxu0 0
        %952 = vmatprep.mubr.bf16.mxu0 0
        %953 = vmatmul.mubr.bf16.gmra.mrb[0].mxu0 %v915
        %v954 = vpop.f32.mrb[0].mxu0
        %v955 = vadd.f32 0.0, %v954
        %v956 = vpop.f32.mrb[0].mxu0
        %v957 = vpop.f32.mrb[0].mxu0
        %v958 = vpop.f32.mrb[0].mxu0
        %959 = vdwg.mxu0
        %961 = vrot.lane.b32.xlu0 %v955, 16
        %v962 = vpop.permute.xlu0 %961
        %vm964 = vcmask 195712
        %965 = vst.msk [vmem:[#allocation2] sm:$0xff] %vm964, %v962
        %966 = vrot.lane.b32.xlu0 %v619, 104
        %v967 = vpop.permute.xlu0 %966
        %968 = vrot.lane.b32.xlu0 %v620, 72
        %v969 = vpop.permute.xlu0 %968
        %v971 = vsel %vm625, %v967, 0
        %v974 = vsel %vm625, %v969, 0
        %976 = vmatprep.subr.bf16.mxu0 0
        %977 = vmatpush1.bf16.xpose.msra.mxu0 %v974
        %978 = vmatprep.subr.bf16.mxu0 0
        %979 = vmatpush1.bf16.xpose.msra.mxu0 0
        %980 = vmatprep.subr.bf16.mxu0 0
        %981 = vmatpush1.bf16.xpose.msra.mxu0 0
        %982 = vmatprep.subr.bf16.mxu0 0
        %983 = vmatpush1.bf16.xpose.msra.mxu0 0
        %984 = vmatprep.subr.bf16.mxu0 0
        %985 = vmatpush1.bf16.xpose.msra.mxu0 0
        %986 = vmatprep.subr.bf16.mxu0 0
        %987 = vmatpush1.bf16.xpose.msra.mxu0 0
        %988 = vmatprep.subr.bf16.mxu0 0
        %989 = vmatpush1.bf16.xpose.msra.mxu0 0
        %990 = vmatprep.subr.bf16.mxu0 0
        %991 = vmatpush1.bf16.xpose.msra.mxu0 0
        %992 = vmatprep.subr.bf16.mxu0 0
        %993 = vmatpush1.bf16.xpose.msra.mxu0 0
        %994 = vmatprep.subr.bf16.mxu0 0
        %995 = vmatpush1.bf16.xpose.msra.mxu0 0
        %996 = vmatprep.subr.bf16.mxu0 0
        %997 = vmatpush1.bf16.xpose.msra.mxu0 0
        %998 = vmatprep.subr.bf16.mxu0 0
        %999 = vmatpush1.bf16.xpose.msra.mxu0 0
        %1000 = vmatprep.subr.bf16.mxu0 0
        %1001 = vmatpush1.bf16.xpose.msra.mxu0 0
        %1002 = vmatprep.subr.bf16.mxu0 0
        %1003 = vmatpush1.bf16.xpose.msra.mxu0 0
        %1004 = vmatprep.subr.bf16.mxu0 0
        %1005 = vmatpush1.bf16.xpose.msra.mxu0 0
        %1006 = vmatprep.subr.bf16.mxu0 0
        %1007 = vmatpush1.bf16.xpose.msra.mxu0 0
        %1008 = vmatprep.mubr.bf16.mxu0 0
        %1009 = vmatmul.mubr.bf16.gmra.mrb[0].mxu0 %v971
        %v1010 = vpop.f32.mrb[0].mxu0
        %v1011 = vadd.f32 0.0, %v1010
        %v1012 = vpop.f32.mrb[0].mxu0
        %v1013 = vpop.f32.mrb[0].mxu0
        %v1014 = vpop.f32.mrb[0].mxu0
        %1015 = vdwg.mxu0
        %v1016 = vsel %vm625, %v1011, -inf
        %1017 = vmax.xlane.f32.xlu0 %v1016
        %v1018 = vpop.xlane.xlu0 %1017
        %v1019 = vsub.f32 %v1011, %v1018
        %v1020 = vmul.f32 %v1019, 1.442695
        %v1021 = vpow.pop %v1020
        %v1022 = vsel %vm625, %v1021, 0.0
        %1023 = vadd.xlane.f32.xlu0 %v1022
        %v1024 = vpop.xlane.xlu0 %1023
        %v1025 = vrcp.pop %v1024
        %v1026 = vmul.f32 %v1021, %v1025
        %v1027 = vpack.c.bf16 %v1026, %v1026
        %1028 = vrot.lane.b32.xlu0 %v621, 104
        %v1029 = vpop.permute.xlu0 %1028
        %v1031 = vsel %vm625, %v1027, 0
        %v1034 = vsel %vm687, %v1029, 0
        %1036 = vmatprep.subr.bf16.mxu0 0
        %1037 = vmatpush1.bf16.msra.mxu0 %v1034
        %1038 = vmatprep.subr.bf16.mxu0 0
        %1039 = vmatpush1.bf16.msra.mxu0 0
        %1040 = vmatprep.subr.bf16.mxu0 0
        %1041 = vmatpush1.bf16.msra.mxu0 0
        %1042 = vmatprep.subr.bf16.mxu0 0
        %1043 = vmatpush1.bf16.msra.mxu0 0
        %1044 = vmatprep.subr.bf16.mxu0 0
        %1045 = vmatpush1.bf16.msra.mxu0 0
        %1046 = vmatprep.subr.bf16.mxu0 0
        %1047 = vmatpush1.bf16.msra.mxu0 0
        %1048 = vmatprep.subr.bf16.mxu0 0
        %1049 = vmatpush1.bf16.msra.mxu0 0
        %1050 = vmatprep.subr.bf16.mxu0 0
        %1051 = vmatpush1.bf16.msra.mxu0 0
        %1052 = vmatprep.subr.bf16.mxu0 0
        %1053 = vmatpush1.bf16.msra.mxu0 0
        %1054 = vmatprep.subr.bf16.mxu0 0
        %1055 = vmatpush1.bf16.msra.mxu0 0
        %1056 = vmatprep.subr.bf16.mxu0 0
        %1057 = vmatpush1.bf16.msra.mxu0 0
        %1058 = vmatprep.subr.bf16.mxu0 0
        %1059 = vmatpush1.bf16.msra.mxu0 0
        %1060 = vmatprep.subr.bf16.mxu0 0
        %1061 = vmatpush1.bf16.msra.mxu0 0
        %1062 = vmatprep.subr.bf16.mxu0 0
        %1063 = vmatpush1.bf16.msra.mxu0 0
        %1064 = vmatprep.subr.bf16.mxu0 0
        %1065 = vmatpush1.bf16.msra.mxu0 0
        %1066 = vmatprep.subr.bf16.mxu0 0
        %1067 = vmatpush1.bf16.msra.mxu0 0
        %1068 = vmatprep.mubr.bf16.mxu0 0
        %1069 = vmatmul.mubr.bf16.gmra.mrb[0].mxu0 %v1031
        %v1070 = vpop.f32.mrb[0].mxu0
        %v1071 = vadd.f32 0.0, %v1070
        %v1072 = vpop.f32.mrb[0].mxu0
        %v1073 = vpop.f32.mrb[0].mxu0
        %v1074 = vpop.f32.mrb[0].mxu0
        %1075 = vdwg.mxu0
        %1077 = vrot.lane.b32.xlu0 %v1071, 24
        %v1078 = vpop.permute.xlu0 %1077
        %vm1080 = vcmask 261312
        %1081 = vst.msk [vmem:[#allocation2] sm:$0xff] %vm1080, %v1078
        %v1082 = vld [vmem:[#allocation2] sm:$0xff]
        %v1083 = vpack.c.bf16 %v1082, %v1082
        %v1084 = vld [vmem:[#allocation9] sm:$0xf]
        %v1085 = vld [vmem:[#allocation9 + $0x4] sm:$0xf]
        %v1086 = vld [vmem:[#allocation9 + $0x8] sm:$0xf]
        %v1087 = vld [vmem:[#allocation9 + $0xc] sm:$0xf]
        %v1088 = vld [vmem:[%s5] sm:$0x1]
        %v1090 = vlaneseq
        %v1091 = vshrl.u32 %v1090, 7
        %v1092 = vsub.s32 0, %v1091
        %v1093 = vrot.slane %v1088, %v1092
        %v1099 = vunpack.c.l.b16 %v1084
        %v1100 = vunpack.c.l.b16 %v1085
        %v1101 = vunpack.c.l.b16 %v1086
        %v1102 = vunpack.c.l.b16 %v1087
        %v1103 = vpack.c.b16 %v1100, %v1099
        %v1104 = vpack.c.b16 %v1102, %v1101
        %v1108 = vsel %vm522, %v1083, 0
        %1110 = vmatprep.subr.bf16.mxu0 0
        %1111 = vmatpush1.bf16.msra.mxu0 %v1103
        %1112 = vmatprep.subr.bf16.mxu0 0
        %1113 = vmatpush1.bf16.msra.mxu0 %v1104
        %1114 = vmatprep.subr.bf16.mxu0 0
        %1115 = vmatpush1.bf16.msra.mxu0 0
        %1116 = vmatprep.subr.bf16.mxu0 0
        %1117 = vmatpush1.bf16.msra.mxu0 0
        %1118 = vmatprep.subr.bf16.mxu0 0
        %1119 = vmatpush1.bf16.msra.mxu0 0
        %1120 = vmatprep.subr.bf16.mxu0 0
        %1121 = vmatpush1.bf16.msra.mxu0 0
        %1122 = vmatprep.subr.bf16.mxu0 0
        %1123 = vmatpush1.bf16.msra.mxu0 0
        %1124 = vmatprep.subr.bf16.mxu0 0
        %1125 = vmatpush1.bf16.msra.mxu0 0
        %1126 = vmatprep.subr.bf16.mxu0 0
        %1127 = vmatpush1.bf16.msra.mxu0 0
        %1128 = vmatprep.subr.bf16.mxu0 0
        %1129 = vmatpush1.bf16.msra.mxu0 0
        %1130 = vmatprep.subr.bf16.mxu0 0
        %1131 = vmatpush1.bf16.msra.mxu0 0
        %1132 = vmatprep.subr.bf16.mxu0 0
        %1133 = vmatpush1.bf16.msra.mxu0 0
        %1134 = vmatprep.subr.bf16.mxu0 0
        %1135 = vmatpush1.bf16.msra.mxu0 0
        %1136 = vmatprep.subr.bf16.mxu0 0
        %1137 = vmatpush1.bf16.msra.mxu0 0
        %1138 = vmatprep.subr.bf16.mxu0 0
        %1139 = vmatpush1.bf16.msra.mxu0 0
        %1140 = vmatprep.subr.bf16.mxu0 0
        %1141 = vmatpush1.bf16.msra.mxu0 0
        %1142 = vmatprep.mubr.bf16.mxu0 0
        %1143 = vmatmul.mubr.bf16.gmra.mrb[0].mxu0 %v1108
        %v1144 = vpop.f32.mrb[0].mxu0
        %v1145 = vadd.f32 %v1093, %v1144
        %v1146 = vpop.f32.mrb[0].mxu0
        %v1147 = vpop.f32.mrb[0].mxu0
        %v1148 = vpop.f32.mrb[0].mxu0
        %1149 = vdwg.mxu0
        %v1150 = vadd.f32 %v494, %v1145
        %v1151 = vld [vmem:[%s6] sm:$0x1]
        %v1152 = vld [vmem:[%s7] sm:$0x1]
        %v1153 = vsel %vm522, %v1150, 0.0
        %1154 = vadd.xlane.f32.xlu0 %v1153
        %v1155 = vpop.xlane.xlu0 %1154
        %v1156 = vrcp.pop 32.0
        %v1157 = vmul.f32 %v1155, %v1156
        %v1158 = vsub.f32 %v1150, %v1157
        %v1159 = vmul.f32 %v1158, %v1158
        %v1160 = vsel %vm522, %v1159, 0.0
        %1161 = vadd.xlane.f32.xlu0 %v1160
        %v1162 = vpop.xlane.xlu0 %1161
        %v1163 = vmul.f32 %v1162, %v1156
        %v1164 = vadd.f32 %v1163, 1e-05
        %v1165 = vrsqrt.pop %v1164
        %v1166 = vmul.f32 %v1158, %v1165
        %v1168 = vlaneseq
        %v1169 = vshrl.u32 %v1168, 7
        %v1170 = vsub.s32 0, %v1169
        %v1171 = vrot.slane %v1151, %v1170
        %v1173 = vmul.f32 %v1166, %v1171
        %v1175 = vlaneseq
        %v1176 = vshrl.u32 %v1175, 7
        %v1177 = vsub.s32 0, %v1176
        %v1178 = vrot.slane %v1152, %v1177
        %v1180 = vadd.f32 %v1173, %v1178
        %1181 = vst.msk [vmem:[%s485] sm:$0xff] %vm522, %v1180
        %v1182 = vadd.f32 %v1180, %v495
        %v1183 = vpack.c.bf16 %v1182, %v1182
        %v1184 = vld [vmem:[#allocation11] sm:$0xff]
        %v1185 = vld [vmem:[#allocation11 + $0x8] sm:$0xff]
        %v1186 = vld [vmem:[#allocation11 + $0x10] sm:$0xff]
        %v1187 = vld [vmem:[#allocation11 + $0x18] sm:$0xff]
        %v1188 = vld [vmem:[%s9] sm:$0x3]
        %v1190 = vlaneseq
        %v1191 = vshrl.u32 %v1190, 7
        %v1192 = vsub.s32 0, %v1191
        %v1193 = vrot.slane %v1188, %v1192
        %v1194 = vlaneseq
        %v1195 = vshrl.u32 %v1194, 7
        %v1196 = vsub.s32 1, %v1195
        %v1197 = vrot.slane %v1188, %v1196
        %v1204 = vunpack.c.l.b16 %v1184
        %v1205 = vunpack.c.h.b16 %v1184
        %v1206 = vunpack.c.l.b16 %v1185
        %v1207 = vunpack.c.h.b16 %v1185
        %v1208 = vunpack.c.l.b16 %v1186
        %v1209 = vunpack.c.h.b16 %v1186
        %v1210 = vunpack.c.l.b16 %v1187
        %v1211 = vunpack.c.h.b16 %v1187
        %v1212 = vpack.c.b16 %v1206, %v1204
        %v1213 = vpack.c.b16 %v1207, %v1205
        %v1214 = vpack.c.b16 %v1210, %v1208
        %v1215 = vpack.c.b16 %v1211, %v1209
        %v1221 = vsel %vm522, %v1183, 0
        %1223 = vmatprep.subr.bf16.mxu0 %v1213
        %1224 = vmatpush1.bf16.msra.mxu0 %v1212
        %1225 = vmatprep.subr.bf16.mxu0 %v1215
        %1226 = vmatpush1.bf16.msra.mxu0 %v1214
        %1227 = vmatprep.subr.bf16.mxu0 0
        %1228 = vmatpush1.bf16.msra.mxu0 0
        %1229 = vmatprep.subr.bf16.mxu0 0
        %1230 = vmatpush1.bf16.msra.mxu0 0
        %1231 = vmatprep.subr.bf16.mxu0 0
        %1232 = vmatpush1.bf16.msra.mxu0 0
        %1233 = vmatprep.subr.bf16.mxu0 0
        %1234 = vmatpush1.bf16.msra.mxu0 0
        %1235 = vmatprep.subr.bf16.mxu0 0
        %1236 = vmatpush1.bf16.msra.mxu0 0
        %1237 = vmatprep.subr.bf16.mxu0 0
        %1238 = vmatpush1.bf16.msra.mxu0 0
        %1239 = vmatprep.subr.bf16.mxu0 0
        %1240 = vmatpush1.bf16.msra.mxu0 0
        %1241 = vmatprep.subr.bf16.mxu0 0
        %1242 = vmatpush1.bf16.msra.mxu0 0
        %1243 = vmatprep.subr.bf16.mxu0 0
        %1244 = vmatpush1.bf16.msra.mxu0 0
        %1245 = vmatprep.subr.bf16.mxu0 0
        %1246 = vmatpush1.bf16.msra.mxu0 0
        %1247 = vmatprep.subr.bf16.mxu0 0
        %1248 = vmatpush1.bf16.msra.mxu0 0
        %1249 = vmatprep.subr.bf16.mxu0 0
        %1250 = vmatpush1.bf16.msra.mxu0 0
        %1251 = vmatprep.subr.bf16.mxu0 0
        %1252 = vmatpush1.bf16.msra.mxu0 0
        %1253 = vmatprep.subr.bf16.mxu0 0
        %1254 = vmatpush1.bf16.msra.mxu0 0
        %1255 = vmatprep.mubr.bf16.mxu0 0
        %1256 = vmatmul.mubr.bf16.gmra.mrb[0].mxu0 %v1221
        %v1257 = vpop.f32.mrb[0].mxu0
        %v1258 = vadd.f32 %v1193, %v1257
        %v1259 = vpop.f32.mrb[0].mxu0
        %v1260 = vadd.f32 %v1197, %v1259
        %v1261 = vpop.f32.mrb[0].mxu0
        %v1262 = vpop.f32.mrb[0].mxu0
        %1263 = vdwg.mxu0
        %1264 = vst [vmem:[%s492] sm:$0xff] %v1258
        %vm1265 = vcmask 130048
        %v1266 = vsel %vm1265, %v1260, -inf
        %1267 = vmax.xlane.f32.xlu0 %v1266
        %v1268 = vpop.xlane.xlu0 %1267
        %v1269 = vsub.f32 %v1260, %v1268
        %v1270 = vmul.f32 %v1269, 1.442695
        %v1271 = vpow.pop %v1270
        %v1272 = vsel %vm1265, %v1271, 0.0
        %1273 = vadd.xlane.f32.xlu0 %v1272
        %v1274 = vpop.xlane.xlu0 %1273
        %v1275 = vrcp.pop %v1274
        %v1276 = vmul.f32 %v1271, %v1275
        %1277 = vst.msk [vmem:[%s492 + $0x8] sm:$0xff] %vm1265, %v1276
        %vm1278 = vcmask 261248
        %v1279 = vsel %vm1278, %v1260, -inf
        %1280 = vmax.xlane.f32.xlu0 %v1279
        %v1281 = vpop.xlane.xlu0 %1280
        %v1282 = vsub.f32 %v1260, %v1281
        %v1283 = vmul.f32 %v1282, 1.442695
        %v1284 = vpow.pop %v1283
        %1286 = vrot.lane.b32.xlu0 %v1284, 112
        %v1287 = vpop.permute.xlu0 %1286
        %v1289 = vsel %vm1265, %v1287, 0.0
        %1290 = vadd.xlane.f32.xlu0 %v1289
        %v1291 = vpop.xlane.xlu0 %1290
        %v1292 = vrcp.pop %v1291
        %v1293 = vmul.f32 %v1284, %v1292
        %1294 = vst.msk [vmem:[%s492 + $0x8] sm:$0xff] %vm1278, %v1293
        %vm1295 = vcmask 392448
        %v1296 = vsel %vm1295, %v1260, -inf
        %1297 = vmax.xlane.f32.xlu0 %v1296
        %v1298 = vpop.xlane.xlu0 %1297
        %v1299 = vsub.f32 %v1260, %v1298
        %v1300 = vmul.f32 %v1299, 1.442695
        %v1301 = vpow.pop %v1300
        %1303 = vrot.lane.b32.xlu0 %v1301, 96
        %v1304 = vpop.permute.xlu0 %1303
        %v1306 = vsel %vm1265, %v1304, 0.0
        %1307 = vadd.xlane.f32.xlu0 %v1306
        %v1308 = vpop.xlane.xlu0 %1307
        %v1309 = vrcp.pop %v1308
        %v1310 = vmul.f32 %v1301, %v1309
        %1311 = vst.msk [vmem:[%s492 + $0x8] sm:$0xff] %vm1295, %v1310
        %vm1312 = vcmask 523648
        %v1313 = vsel %vm1312, %v1260, -inf
        %1314 = vmax.xlane.f32.xlu0 %v1313
        %v1315 = vpop.xlane.xlu0 %1314
        %v1316 = vsub.f32 %v1260, %v1315
        %v1317 = vmul.f32 %v1316, 1.442695
        %v1318 = vpow.pop %v1317
        %1320 = vrot.lane.b32.xlu0 %v1318, 80
        %v1321 = vpop.permute.xlu0 %1320
        %v1323 = vsel %vm1265, %v1321, 0.0
        %1324 = vadd.xlane.f32.xlu0 %v1323
        %v1325 = vpop.xlane.xlu0 %1324
        %v1326 = vrcp.pop %v1325
        %v1327 = vmul.f32 %v1318, %v1326
        %1328 = vst.msk [vmem:[%s492 + $0x8] sm:$0xff] %vm1312, %v1327
        %s1329 = sand.u32 %s264, 1
        %s1330 = scalar_lea.sflag [#allocation5], %s1329
        %s1331 = sand.u32 %s264, 1
        %s1332 = smul.addr %s1331, 8
        %s1333 = scalar_lea.vmem [#allocation12], %s1332
        %s1334 = sand.u32 %s290, 1
        %s1335 = scalar_lea.sflag [#allocation14], %s1334
        %s1336 = sand.u32 %s290, 1
        %s1337 = smul.addr %s1336, 16
        %s1338 = scalar_lea.vmem [#allocation13], %s1337
        // Predicated region
        $region81: #{tpu_custom_call.1} parent=59 // pred_check
          %p1339 = pneg %p274
        $region82: #{tpu_custom_call.1} parent=59 // pred_check_branch
          %1341 = sbr.rel (%p1339) target = $region84
        $region83: #{tpu_custom_call.1} parent=59 // pred_region
          %s1343 = ssub.s32 128, 128
          %1344 = vsyncadd %s1330, %s1343
          %s1345 = smul.addr %s36, 128
          %s1346 = scalar_lea.hbm %s10, %s1345
          %s1348 = sshll.u32 %s1333, 4
          %s1349 = int_to_ptr.vmem [resolvable:$true] %s1348
          %1351 = dma.vmem_to_hbm [thread:$0]  %s1349, 128, %s1346, %s1330
        $region84: #{tpu_custom_call.1} parent=59 // pred_fallthru
          _
        // Predicated region
        $region85: #{tpu_custom_call.1} parent=59 // pred_check
          %p1352 = pneg %p300
        $region86: #{tpu_custom_call.1} parent=59 // pred_check_branch
          %1354 = sbr.rel (%p1352) target = $region88
        $region87: #{tpu_custom_call.1} parent=59 // pred_region
          %s1356 = ssub.s32 256, 256
          %1357 = vsyncadd %s1335, %s1356
          %s1358 = smul.addr %s36, 2
          %s1359 = smul.addr %s1358, 128
          %s1360 = scalar_lea.hbm %s11, %s1359
          %s1362 = sshll.u32 %s1338, 4
          %s1363 = int_to_ptr.vmem [resolvable:$true] %s1362
          %1365 = dma.vmem_to_hbm [thread:$0]  %s1363, 256, %s1360, %s1335
        $region88: #{tpu_custom_call.1} parent=59 // pred_fallthru
          _
      $region60: #{tpu_custom_call.1} parent=5 // pred_fallthru
        _
      %p1366 = scmp.le.s32.totalorder 2, %s31
      // Predicated region
      $region89: #{tpu_custom_call.1} parent=5 // pred_check
        %p1367 = pneg %p1366
      $region90: #{tpu_custom_call.1} parent=5 // pred_check_branch
        %1369 = sbr.rel (%p1367) target = $region92
      $region91: #{tpu_custom_call.1} parent=5 // pred_region
        %s1370 = ssub.s32 %s31, 2
        // Predicated region
        $region93: #{tpu_custom_call.1} parent=91 // pred_check
          %p1371 = pneg %p280
        $region94: #{tpu_custom_call.1} parent=91 // pred_check_branch
          %1373 = sbr.rel (%p1371) target = $region96
        $region95: #{tpu_custom_call.1} parent=91 // pred_region
          %s1374 = sand.u32 %s265, 1
          %s1375 = scalar_lea.sflag [#allocation5], %s1374
          %s1376 = sand.u32 %s265, 1
          %s1377 = smul.addr %s1376, 8
          %s1378 = scalar_lea.vmem [#allocation12], %s1377
          %1379 = dma.done %s1375, 128
        $region96: #{tpu_custom_call.1} parent=91 // pred_fallthru
          _
        // Predicated region
        $region97: #{tpu_custom_call.1} parent=91 // pred_check
          %p1380 = pneg %p306
        $region98: #{tpu_custom_call.1} parent=91 // pred_check_branch
          %1382 = sbr.rel (%p1380) target = $region100
        $region99: #{tpu_custom_call.1} parent=91 // pred_region
          %s1383 = sand.u32 %s291, 1
          %s1384 = scalar_lea.sflag [#allocation14], %s1383
          %s1385 = sand.u32 %s291, 1
          %s1386 = smul.addr %s1385, 16
          %s1387 = scalar_lea.vmem [#allocation13], %s1386
          %1388 = dma.done %s1384, 256
        $region100: #{tpu_custom_call.1} parent=91 // pred_fallthru
          _
      $region92: #{tpu_custom_call.1} parent=5 // pred_fallthru
        _
    $region6: #{tpu_custom_call.1} parent=1 // loop_footer
      %s35 = sadd.s32 1, %s31
    $region7: #{tpu_custom_call.1} parent=1 // loop_footer_branch
      %30 = sbr.rel target = $region3
    $region8: #{tpu_custom_call.1} parent=1 // loop_exit
      _
    %1389 = vsyncpa [#allocation4], 1
    %s1390 = scalar_lea.sflag [#allocation4], 1
    %1391 = vsyncpa %s1390, 1
    %1392 = vsyncpa [#allocation7], 1
    %s1393 = scalar_lea.sflag [#allocation7], 1
    %1394 = vsyncpa %s1393, 1
    %1395 = vsyncpa [#allocation10], 1
    %1396 = vsyncpa [#allocation5], 1
    %s1397 = scalar_lea.sflag [#allocation5], 1
    %1398 = vsyncpa %s1397, 1
    %1399 = vsyncpa [#allocation14], 1
    %s1400 = scalar_lea.sflag [#allocation14], 1
    %1401 = vsyncpa %s1400, 1

</llo_original>
